<compile_context>
chip_gen: v7x
topology: tpu7x:2x2x1
jax: 0.10.0
libtpu: 0.0.40
codegen_flags: <defaults>
</compile_context>

<pallas_src>
import functools

import jax
import jax.numpy as jnp
from jax.experimental import pallas as pl
from jax.experimental.pallas import tpu as pltpu

NEG_SLOPE = 0.01   # default negative_slope of torch LeakyReLU / F.leaky_relu
BN_EPS = 1e-5      # default torch BatchNorm1d eps


def _leaky(h):
    return jnp.where(h > 0, h, NEG_SLOPE * h)


def _round_up(v, m):
    return (v + m - 1) // m * m


# ----------------------------- Pallas kernel ------------------------------- #

def _fused_kernel(eps_ref, adj_ref, x_hbm_ref,
                  w1_ref, c1_ref, w2_ref, c2_ref,
                  cw1_ref, cc1_ref, cw2_ref, cc2_ref, cw3_ref, cb3_ref,
                  out_ref,
                  h_ref, dma_sem, *adj_scratch,
                  tile_m, num_layers, c_conv, cin_max, adj_resident):
    """grid = (layer l, node-row tile m); both axes are serial ("arbitrary")."""
    l = pl.program_id(0)
    m = pl.program_id(1)
    row = pl.multiple_of(m * tile_m, tile_m)

    # One-time staging (l==0, m==0): x -> phase-0 feature scratch; adjacency ->
    # resident VMEM copy (when it fits).  Both are plain HBM refs (pl.ANY), so
    # neither is double-buffered by the pipeline.
    @pl.when(jnp.logical_and(l == 0, m == 0))
    def _():
        cp = pltpu.make_async_copy(x_hbm_ref, h_ref.at[0], dma_sem)
        cp.start()
        cp.wait()
        if adj_resident:
            cpa = pltpu.make_async_copy(adj_ref, adj_scratch[0], dma_sem)
            cpa.start()
            cpa.wait()
        if cin_max > c_conv:
            # Tail feature columns of the write phase must start as zeros
            # (layer stores only write the first c_conv columns).
            h_ref[1] = jnp.zeros(h_ref.shape[1:], h_ref.dtype)

    src = l % 2                 # features of layer l live in phase l % 2
    dst = (l + 1) % 2

    if adj_resident:
        a_tile = adj_scratch[0][pl.ds(row, tile_m), :]      # (tile_m, n_pad) bf16
    else:
        a_tile = adj_ref[...]                               # streamed row block

    h_full = h_ref[src]                                     # (n_pad, cin_max) bf16
    h_rows = h_ref[src, pl.ds(row, tile_m), :].astype(jnp.float32)

    # GIN aggregation: A @ h + (1 + eps_l) * h ; bf16 x bf16 MXU, f32 accumulate.
    agg = jnp.dot(a_tile, h_full, preferred_element_type=jnp.float32)
    agg = agg + (1.0 + eps_ref[l]) * h_rows

    # Inner MLP (Linear -> BN -> LeakyReLU -> Linear); BN folded into W1/c1.
    # Outer BatchNorm (absent on the last conv layer) folded into W2/c2.
    z = _leaky(jnp.dot(agg, w1_ref[...], preferred_element_type=jnp.float32)
               + c1_ref[...])
    h_out = _leaky(jnp.dot(z, w2_ref[...], preferred_element_type=jnp.float32)
                   + c2_ref[...])

    # Store this tile's rows into the other phase for the next layer.
    @pl.when(l < num_layers - 1)
    def _():
        h_ref[dst, pl.ds(row, tile_m), pl.ds(0, c_conv)] = h_out.astype(h_ref.dtype)

    # Classifier MLP is per-node -> fused into the last conv layer's tile.
    @pl.when(l == num_layers - 1)
    def _():
        g = _leaky(jnp.dot(h_out, cw1_ref[...], preferred_element_type=jnp.float32)
                   + cc1_ref[...])
        g = _leaky(jnp.dot(g, cw2_ref[...], preferred_element_type=jnp.float32)
                   + cc2_ref[...])
        # Final (C_mlp -> 1) projection as a VPU multiply + lane reduce.
        score = jnp.sum(g * cw3_ref[...], axis=-1, keepdims=True) + cb3_ref[...]
        out_ref[pl.ds(row, tile_m), :] = score


# ------------------------------ host wrapper ------------------------------- #

def _fold_bn(bn):
    """Fold eval-mode BatchNorm1d into per-channel scale/shift (shape (1, C))."""
    gamma, beta, mean, var = bn
    scale = gamma / jnp.sqrt(var + BN_EPS)
    shift = beta - mean * scale
    return scale[None, :], shift[None, :]


def _vmem_budget_bytes():
    cap = 64 << 20                            # conservative fallback (v7x physical)
    try:
        info = pltpu.get_tpu_info()
        cap = int(getattr(info, "vmem_capacity_bytes", cap)) or cap
    except Exception:
        pass
    # ~96 MiB on v5e/v6e (128 MiB physical), ~48 MiB on v7x (64 MiB physical).
    return int(cap * 3 // 4)


def _plan_tiling(n, cin_max, c_conv, c_mlp, budget):
    """Pick (tile_m, n_pad, adj_resident, vmem_limit).

    tile_m is the largest 128-multiple row tile (<= 1024) whose working set
    fits; the dense adjacency stays VMEM-resident across all layers when it
    fits (removes (L-1)x of the dominant HBM stream)."""
    cmax = max(cin_max, c_conv, c_mlp)

    def fixed_bytes(n_pad):
        return (2 * n_pad * cin_max * 2                                    # bf16 feature scratch (2 phases)
                + 8 * (cin_max * c_conv + c_conv * c_conv + 2 * c_conv)    # conv weights (double-buffered)
                + 8 * (c_conv * c_mlp + c_mlp * c_mlp + 3 * c_mlp + 1)     # classifier weights
                + 8 * n_pad                                                # (n_pad, 1) f32 output
                + (2 << 20))                                               # Mosaic internal slack

    tile_m = min(1024, _round_up(n, 128))
    while True:
        n_pad = _round_up(n, tile_m)
        work = 2 * tile_m * n_pad + 32 * tile_m * cmax      # A row slab + f32 temporaries
        fb = fixed_bytes(n_pad)
        adj_resident = fb + 2 * n_pad * n_pad + work <= budget
        a_bytes = 2 * n_pad * n_pad if adj_resident else 4 * tile_m * n_pad
        if fb + a_bytes + work <= budget or tile_m <= 128:
            break
        tile_m //= 2
    vmem_limit = int(max(budget, 32 << 20))
    return tile_m, n_pad, adj_resident, vmem_limit


def m1_forward(x, edge_index, params):
    n, f = x.shape
    conv = params["conv"]
    num_layers = len(conv)
    c_conv = conv[0]["w2"].shape[1]
    cp = params["classifier"]
    c_mlp = cp["w2"].shape[1]
    cin_max = max(f, c_conv)

    budget = _vmem_budget_bytes()
    tile_m, n_pad, adj_resident, vmem_limit = _plan_tiling(
        n, cin_max, c_conv, c_mlp, budget)

    # Dense adjacency A[dst, src] (edge multiplicity) in bf16: small integer
    # counts are exact in bf16 and the MXU runs at its native bf16 rate.
    adj = jnp.zeros((n_pad, n_pad), jnp.float32)
    adj = adj.at[edge_index[1], edge_index[0]].add(1.0)
    adj = adj.astype(jnp.bfloat16)

    # Node features (bf16, zero-padded); staged once into the feature scratch
    # by an in-kernel DMA -> no double-buffered resident VMEM input for x.
    x_pad = jnp.zeros((n_pad, cin_max), jnp.bfloat16)
    x_pad = x_pad.at[:n, :f].set(x.astype(jnp.bfloat16))

    # Per-layer eps lives in SMEM (tiny scalar vector).
    eps_arr = jnp.stack([lp["eps"] for lp in conv]).astype(jnp.float32)

    # Fold BatchNorm into weights; stack per-layer conv params along axis 0.
    w1_s, c1_s, w2_s, c2_s = [], [], [], []
    for i, lp in enumerate(conv):
        s1, t1 = _fold_bn(lp["bn1"])
        w1 = lp["w1"] * s1
        c1 = lp["b1"] * s1 + t1
        if i != num_layers - 1:
            so, to = _fold_bn(lp["bn_out"])
            w2 = lp["w2"] * so
            c2 = lp["b2"] * so + to
        else:                                # last conv layer: outer BN skipped
            w2 = lp["w2"]
            c2 = lp["b2"]
        # Zero-padded W1 rows guarantee stale tail feature columns never leak.
        w1p = jnp.zeros((cin_max, c_conv), jnp.float32).at[: w1.shape[0]].set(w1)
        w1_s.append(w1p)
        c1_s.append(c1)
        w2_s.append(w2)
        c2_s.append(c2)
    w1_s = jnp.stack(w1_s)                  # (L, cin_max, C)
    c1_s = jnp.stack(c1_s)                  # (L, 1, C)
    w2_s = jnp.stack(w2_s)                  # (L, C, C)
    c2_s = jnp.stack(c2_s)                  # (L, 1, C)

    # Classifier (BN folded; final projection kept as a row vector).
    s1, t1 = _fold_bn(cp["bn1"])
    s2, t2 = _fold_bn(cp["bn2"])
    cw1 = cp["w1"] * s1
    cc1 = cp["b1"] * s1 + t1
    cw2 = cp["w2"] * s2
    cc2 = cp["b2"] * s2 + t2
    cw3 = jnp.reshape(cp["w3"], (1, c_mlp))
    cb3 = jnp.reshape(cp["b3"], (1, 1))

    if adj_resident:
        adj_spec = pl.BlockSpec(memory_space=pl.ANY)       # one in-kernel DMA
    else:
        adj_spec = pl.BlockSpec((tile_m, n_pad), lambda l, m: (m, 0))

    scratch = [
        pltpu.VMEM((2, n_pad, cin_max), jnp.bfloat16),     # phase-indexed features
        pltpu.SemaphoreType.DMA,                           # one-time staging DMAs
    ]
    if adj_resident:
        scratch.append(pltpu.VMEM((n_pad, n_pad), jnp.bfloat16))

    kernel = functools.partial(
        _fused_kernel, tile_m=tile_m, num_layers=num_layers,
        c_conv=c_conv, cin_max=cin_max, adj_resident=adj_resident)

    out = pl.pallas_call(
        kernel,
        out_shape=jax.ShapeDtypeStruct((n_pad, 1), jnp.float32),
        grid_spec=pltpu.PrefetchScalarGridSpec(
            num_scalar_prefetch=0,
            grid=(num_layers, n_pad // tile_m),
            in_specs=[
                pl.BlockSpec(memory_space=pltpu.MemorySpace.SMEM),           # eps (L,)
                adj_spec,                                                    # A
                pl.BlockSpec(memory_space=pl.ANY),                           # x (staged once)
                pl.BlockSpec((None, cin_max, c_conv), lambda l, m: (l, 0, 0)),  # W1'
                pl.BlockSpec((None, 1, c_conv), lambda l, m: (l, 0, 0)),        # c1
                pl.BlockSpec((None, c_conv, c_conv), lambda l, m: (l, 0, 0)),   # W2'
                pl.BlockSpec((None, 1, c_conv), lambda l, m: (l, 0, 0)),        # c2
                pl.BlockSpec((c_conv, c_mlp), lambda l, m: (0, 0)),          # cls W1'
                pl.BlockSpec((1, c_mlp), lambda l, m: (0, 0)),               # cls c1
                pl.BlockSpec((c_mlp, c_mlp), lambda l, m: (0, 0)),           # cls W2'
                pl.BlockSpec((1, c_mlp), lambda l, m: (0, 0)),               # cls c2
                pl.BlockSpec((1, c_mlp), lambda l, m: (0, 0)),               # cls w3 row
                pl.BlockSpec((1, 1), lambda l, m: (0, 0)),                   # cls b3
            ],
            out_specs=pl.BlockSpec((n_pad, 1), lambda l, m: (0, 0)),
            scratch_shapes=scratch),
        compiler_params=pltpu.CompilerParams(
            # Layer l+1's aggregation needs EVERY row of layer l, so both grid
            # axes are true sequential dependencies (no megacore split here).
            dimension_semantics=("arbitrary", "arbitrary"),
            vmem_limit_bytes=vmem_limit),
    )(eps_arr, adj, x_pad, w1_s, c1_s, w2_s, c2_s,
      cw1, cc1, cw2, cc2, cw3, cb3)

    return out[:n, 0]     # torch.flatten(x)


# -------------------------- reference (pure JAX) --------------------------- #

def _mm(a, b):
    return jnp.dot(a, b, precision=jax.lax.Precision.HIGHEST)


def m1_reference(x, edge_index, params):
    """Pure-JAX reference mirroring the kernel's precision policy: node
    features are carried between layers in bf16 and the GIN aggregation is a
    bf16 x bf16 matmul with f32 accumulation; everything else is f32."""
    n = x.shape[0]
    adj = jnp.zeros((n, n), jnp.float32).at[edge_index[1], edge_index[0]].add(1.0)
    adj = adj.astype(jnp.bfloat16)
    conv = params["conv"]
    h = x.astype(jnp.float32)
    for i, lp in enumerate(conv):
        h_bf = h.astype(jnp.bfloat16)                       # = kernel's scratch
        agg = (jnp.dot(adj, h_bf, preferred_element_type=jnp.float32)
               + (1.0 + lp["eps"]) * h_bf.astype(jnp.float32))
        s1, t1 = _fold_bn(lp["bn1"])
        t = _leaky((_mm(agg, lp["w1"]) + lp["b1"]) * s1 + t1)
        t = _mm(t, lp["w2"]) + lp["b2"]
        if i != len(conv) - 1:
            so, to = _fold_bn(lp["bn_out"])
            t = t * so + to
        h = _leaky(t)
    cp = params["classifier"]
    s1, t1 = _fold_bn(cp["bn1"])
    s2, t2 = _fold_bn(cp["bn2"])
    h = _leaky((_mm(h, cp["w1"]) + cp["b1"]) * s1 + t1)
    h = _leaky((_mm(h, cp["w2"]) + cp["b2"]) * s2 + t2)
    h = _mm(h, cp["w3"]) + cp["b3"]
    return h.reshape(-1)


# ------------------------------ param init --------------------------------- #

def init_params(key, num_node_features, size_conv, num_conv_layers, size_mlp):
    def bn_params(k, c):
        k1, k2, k3 = jax.random.split(k, 3)
        gamma = 1.0 + 0.1 * jax.random.normal(k1, (c,), jnp.float32)
        beta = 0.1 * jax.random.normal(k2, (c,), jnp.float32)
        mean = 0.1 * jax.random.normal(k3, (c,), jnp.float32)
        var = jnp.ones((c,), jnp.float32)
        return (gamma, beta, mean, var)

    def linear(k, cin, cout):
        k1, k2 = jax.random.split(k)
        w = jax.random.normal(k1, (cin, cout), jnp.float32) / jnp.sqrt(cin)
        b = 0.1 * jax.random.normal(k2, (1, cout), jnp.float32)
        return w, b

    params = {"conv": [], "classifier": {}}
    cin = num_node_features
    for _ in range(num_conv_layers):
        key, k1, k2, k3, k4, k5 = jax.random.split(key, 6)
        w1, b1 = linear(k1, cin, size_conv)
        w2, b2 = linear(k2, size_conv, size_conv)
        params["conv"].append({
            "w1": w1, "b1": b1, "bn1": bn_params(k3, size_conv),
            "w2": w2, "b2": b2,
            "eps": 0.1 * jax.random.normal(k4, (), jnp.float32),  # train_eps=True
            "bn_out": bn_params(k5, size_conv),
        })
        cin = size_conv

    key, k1, k2, k3, k4, k5 = jax.random.split(key, 6)
    w1, b1 = linear(k1, cin, size_mlp)
    w2, b2 = linear(k2, size_mlp, size_mlp)
    w3, b3 = linear(k3, size_mlp, 1)
    params["classifier"] = {
        "w1": w1, "b1": b1, "bn1": bn_params(k4, size_mlp),
        "w2": w2, "b2": b2, "bn2": bn_params(k5, size_mlp),
        "w3": w3, "b3": b3,
    }
    return params


# --------------------------------- main ------------------------------------ #

if __name__ == "__main__":
    key = jax.random.PRNGKey(0)

    # Small synthetic graph: 48 nodes, 8 node features.  Hidden widths are 256
    # so v6e/v7x's 256-wide MXUs are fully fed (review item); n is padded to
    # 128, giving one 128-row tile per layer: grid = (2 layers, 1 tile).
    N, F = 48, 8
    SIZE_CONV, NUM_CONV, SIZE_MLP = 256, 2, 256

    key, kx, ke = jax.random.split(key, 3)
    x = jax.random.normal(kx, (N, F), jnp.float32)

    # Undirected ring + a few random chords (both directions).
    src = jnp.arange(N, dtype=jnp.int32)
    dst = (src + 1) % N
    extra_src = jax.random.randint(ke, (8,), 0, N, dtype=jnp.int32)
    extra_dst = (extra_src + 5) % N
    edge_src = jnp.concatenate([src, dst, extra_src, extra_dst])
    edge_dst = jnp.concatenate([dst, src, extra_dst, extra_src])
    edge_index = jnp.stack([edge_src, edge_dst])  # [2, E]

    params = init_params(key, F, SIZE_CONV, NUM_CONV, SIZE_MLP)

    out = m1_forward(x, edge_index, params)
    out = jax.block_until_ready(out)

    ref = m1_reference(x, edge_index, params)
    assert out.shape == (N,), out.shape
    max_err = jnp.max(jnp.abs(out - ref))
    assert jnp.allclose(out, ref, rtol=2e-3, atol=2e-3), (max_err, out, ref)

    print("KERNEL_OK")
</pallas_src>

<mosaic_0001>
module attributes {stable_mosaic.version = 11 : i64} {
  func.func @_fused_kernel(%arg0: i32, %arg1: i32, %arg2: memref<2xf32, #tpu.memory_space<smem>>, %arg3: memref<128x128xbf16, #tpu.memory_space<any>>, %arg4: memref<128x256xbf16, #tpu.memory_space<any>>, %arg5: memref<1x256x256xf32, #tpu.memory_space<vmem>>, %arg6: memref<1x1x256xf32, #tpu.memory_space<vmem>>, %arg7: memref<1x256x256xf32, #tpu.memory_space<vmem>>, %arg8: memref<1x1x256xf32, #tpu.memory_space<vmem>>, %arg9: memref<256x256xf32, #tpu.memory_space<vmem>>, %arg10: memref<1x256xf32, #tpu.memory_space<vmem>>, %arg11: memref<256x256xf32, #tpu.memory_space<vmem>>, %arg12: memref<1x256xf32, #tpu.memory_space<vmem>>, %arg13: memref<1x256xf32, #tpu.memory_space<vmem>>, %arg14: memref<1x1xf32, #tpu.memory_space<vmem>>, %arg15: memref<128x1xf32, #tpu.memory_space<vmem>>, %arg16: memref<2x128x256xbf16, #tpu.memory_space<vmem>>, %arg17: memref<!tpu.dma_semaphore, #tpu.memory_space<semaphore_mem>>, %arg18: memref<128x128xbf16, #tpu.memory_space<vmem>>) attributes {dimension_semantics = [#tpu.dimension_semantics<arbitrary>, #tpu.dimension_semantics<arbitrary>], iteration_bounds = array<i64: 2, 1>, scalar_prefetch = 0 : i64, scratch_operands = 3 : i64, tpu.core_type = #tpu.core_type<tc>, window_params = [{transform_indices = @transform_0, window_bounds = array<i64: 2>}, {}, {}, {transform_indices = @transform_3, window_bounds = array<i64: 1, 256, 256>}, {transform_indices = @transform_4, window_bounds = array<i64: 1, 1, 256>}, {transform_indices = @transform_5, window_bounds = array<i64: 1, 256, 256>}, {transform_indices = @transform_6, window_bounds = array<i64: 1, 1, 256>}, {pipeline_mode = #tpu.pipeline_mode<synchronous>, transform_indices = @transform_7, window_bounds = array<i64: 256, 256>}, {pipeline_mode = #tpu.pipeline_mode<synchronous>, transform_indices = @transform_8, window_bounds = array<i64: 1, 256>}, {pipeline_mode = #tpu.pipeline_mode<synchronous>, transform_indices = @transform_9, window_bounds = array<i64: 256, 256>}, {pipeline_mode = #tpu.pipeline_mode<synchronous>, transform_indices = @transform_10, window_bounds = array<i64: 1, 256>}, {pipeline_mode = #tpu.pipeline_mode<synchronous>, transform_indices = @transform_11, window_bounds = array<i64: 1, 256>}, {pipeline_mode = #tpu.pipeline_mode<synchronous>, transform_indices = @transform_12, window_bounds = array<i64: 1, 1>}, {pipeline_mode = #tpu.pipeline_mode<synchronous>, transform_indices = @transform_13, window_bounds = array<i64: 128, 1>}]} {
    %c128_i32 = arith.constant 128 : i32
    %0 = arith.muli %arg1, %c128_i32 : i32
    %1 = tpu.assume_multiple %0, 128 : i32
    %c0_i32 = arith.constant 0 : i32
    %2 = arith.cmpi eq, %arg0, %c0_i32 : i32
    %c0_i32_0 = arith.constant 0 : i32
    %3 = arith.cmpi eq, %arg1, %c0_i32_0 : i32
    %4 = arith.andi %2, %3 : i1
    %5 = arith.extui %4 : i1 to i32
    %c0_i32_1 = arith.constant 0 : i32
    %6 = arith.cmpi ne, %5, %c0_i32_1 : i32
    scf.if %6 {
      %c0_i32_39 = arith.constant 0 : i32
      %c0_i32_40 = arith.constant 0 : i32
      %c0_i32_41 = arith.constant 0 : i32
      %75 = tpu.memref_slice %arg16[%c0_i32_39, %c0_i32_40, %c0_i32_41] : memref<2x128x256xbf16, #tpu.memory_space<vmem>> -> memref<1x128x256xbf16, #tpu.memory_space<vmem>>
      %76 = tpu.memref_squeeze %75 : memref<1x128x256xbf16, #tpu.memory_space<vmem>> -> memref<128x256xbf16, #tpu.memory_space<vmem>>
      tpu.enqueue_dma source(%arg4 : memref<128x256xbf16, #tpu.memory_space<any>>) target(%76 : memref<128x256xbf16, #tpu.memory_space<vmem>>) target_semaphore(%arg17 : memref<!tpu.dma_semaphore, #tpu.memory_space<semaphore_mem>>)
      %c0_i32_42 = arith.constant 0 : i32
      %c0_i32_43 = arith.constant 0 : i32
      %c0_i32_44 = arith.constant 0 : i32
      %77 = tpu.memref_slice %arg16[%c0_i32_42, %c0_i32_43, %c0_i32_44] : memref<2x128x256xbf16, #tpu.memory_space<vmem>> -> memref<1x128x256xbf16, #tpu.memory_space<vmem>>
      %78 = tpu.memref_squeeze %77 : memref<1x128x256xbf16, #tpu.memory_space<vmem>> -> memref<128x256xbf16, #tpu.memory_space<vmem>>
      tpu.wait_dma2 semaphore(%arg17 : memref<!tpu.dma_semaphore, #tpu.memory_space<semaphore_mem>>) src(%arg4 : memref<128x256xbf16, #tpu.memory_space<any>>) dst(%78 : memref<128x256xbf16, #tpu.memory_space<vmem>>)
      tpu.enqueue_dma source(%arg3 : memref<128x128xbf16, #tpu.memory_space<any>>) target(%arg18 : memref<128x128xbf16, #tpu.memory_space<vmem>>) target_semaphore(%arg17 : memref<!tpu.dma_semaphore, #tpu.memory_space<semaphore_mem>>)
      tpu.wait_dma2 semaphore(%arg17 : memref<!tpu.dma_semaphore, #tpu.memory_space<semaphore_mem>>) src(%arg3 : memref<128x128xbf16, #tpu.memory_space<any>>) dst(%arg18 : memref<128x128xbf16, #tpu.memory_space<vmem>>)
    } else {
    }
    %c2_i32 = arith.constant 2 : i32
    %c0_i32_2 = arith.constant 0 : i32
    %7 = arith.cmpi eq, %c2_i32, %c0_i32_2 : i32
    %c1_i32 = arith.constant 1 : i32
    %8 = arith.select %7, %c1_i32, %c2_i32 : i32
    %9 = arith.remsi %arg0, %8 : i32
    %c0_i32_3 = arith.constant 0 : i32
    %10 = arith.cmpi ne, %9, %c0_i32_3 : i32
    %c0_i32_4 = arith.constant 0 : i32
    %11 = arith.cmpi slt, %9, %c0_i32_4 : i32
    %c0_i32_5 = arith.constant 0 : i32
    %12 = arith.cmpi slt, %8, %c0_i32_5 : i32
    %13 = arith.xori %11, %12 : i1
    %14 = arith.andi %13, %10 : i1
    %15 = arith.addi %9, %8 : i32
    %16 = arith.select %14, %15, %9 : i32
    %c1_i32_6 = arith.constant 1 : i32
    %17 = arith.addi %arg0, %c1_i32_6 : i32
    %c2_i32_7 = arith.constant 2 : i32
    %c0_i32_8 = arith.constant 0 : i32
    %18 = arith.cmpi eq, %c2_i32_7, %c0_i32_8 : i32
    %c1_i32_9 = arith.constant 1 : i32
    %19 = arith.select %18, %c1_i32_9, %c2_i32_7 : i32
    %20 = arith.remsi %17, %19 : i32
    %c0_i32_10 = arith.constant 0 : i32
    %21 = arith.cmpi ne, %20, %c0_i32_10 : i32
    %c0_i32_11 = arith.constant 0 : i32
    %22 = arith.cmpi slt, %20, %c0_i32_11 : i32
    %c0_i32_12 = arith.constant 0 : i32
    %23 = arith.cmpi slt, %19, %c0_i32_12 : i32
    %24 = arith.xori %22, %23 : i1
    %25 = arith.andi %24, %21 : i1
    %26 = arith.addi %20, %19 : i32
    %27 = arith.select %25, %26, %20 : i32
    %28 = arith.index_cast %1 : i32 to index
    %c0 = arith.constant 0 : index
    %29 = vector.load %arg18[%28, %c0] : memref<128x128xbf16, #tpu.memory_space<vmem>>, vector<128x128xbf16>
    %30 = arith.index_cast %16 : i32 to index
    %c0_13 = arith.constant 0 : index
    %c0_14 = arith.constant 0 : index
    %31 = vector.load %arg16[%30, %c0_13, %c0_14] : memref<2x128x256xbf16, #tpu.memory_space<vmem>>, vector<1x128x256xbf16>
    %32 = vector.shape_cast %31 : vector<1x128x256xbf16> to vector<128x256xbf16>
    %33 = arith.index_cast %16 : i32 to index
    %34 = arith.index_cast %1 : i32 to index
    %c0_15 = arith.constant 0 : index
    %35 = vector.load %arg16[%33, %34, %c0_15] : memref<2x128x256xbf16, #tpu.memory_space<vmem>>, vector<1x128x256xbf16>
    %36 = vector.shape_cast %35 : vector<1x128x256xbf16> to vector<128x256xbf16>
    %37 = arith.extf %36 : vector<128x256xbf16> to vector<128x256xf32>
    %cst = arith.constant dense<0.000000e+00> : vector<128x256xf32>
    %38 = tpu.matmul %29, %32, %cst {dimension_numbers = #tpu.dot_dimension_numbers<[1], [0], [0], [1], [0, 0, 1, 1], [], []>} : vector<128x128xbf16>, vector<128x256xbf16>, vector<128x256xf32> -> vector<128x256xf32>
    %39 = arith.index_cast %arg0 : i32 to index
    %40 = memref.load %arg2[%39] : memref<2xf32, #tpu.memory_space<smem>>
    %cst_16 = arith.constant 1.000000e+00 : f32
    %41 = arith.addf %cst_16, %40 : f32
    %42 = vector.broadcast %41 : f32 to vector<128x256xf32>
    %43 = arith.mulf %42, %37 : vector<128x256xf32>
    %44 = arith.addf %38, %43 : vector<128x256xf32>
    %c0_17 = arith.constant 0 : index
    %c0_18 = arith.constant 0 : index
    %c0_19 = arith.constant 0 : index
    %45 = vector.load %arg5[%c0_17, %c0_18, %c0_19] : memref<1x256x256xf32, #tpu.memory_space<vmem>>, vector<1x256x256xf32>
    %46 = vector.shape_cast %45 : vector<1x256x256xf32> to vector<256x256xf32>
    %cst_20 = arith.constant dense<0.000000e+00> : vector<128x256xf32>
    %47 = tpu.matmul %44, %46, %cst_20 {dimension_numbers = #tpu.dot_dimension_numbers<[1], [0], [0], [1], [0, 0, 1, 1], [], []>} : vector<128x256xf32>, vector<256x256xf32>, vector<128x256xf32> -> vector<128x256xf32>
    %c0_21 = arith.constant 0 : index
    %c0_22 = arith.constant 0 : index
    %c0_23 = arith.constant 0 : index
    %48 = vector.load %arg6[%c0_21, %c0_22, %c0_23] : memref<1x1x256xf32, #tpu.memory_space<vmem>>, vector<1x1x256xf32>
    %49 = vector.shape_cast %48 : vector<1x1x256xf32> to vector<1x256xf32>
    %50 = vector.broadcast %49 : vector<1x256xf32> to vector<128x256xf32>
    %51 = arith.addf %47, %50 : vector<128x256xf32>
    %cst_24 = arith.constant 0.000000e+00 : f32
    %52 = vector.broadcast %cst_24 : f32 to vector<128x256xf32>
    %53 = arith.cmpf ogt, %51, %52 : vector<128x256xf32>
    %cst_25 = arith.constant 0.00999999977 : f32
    %54 = vector.broadcast %cst_25 : f32 to vector<128x256xf32>
    %55 = arith.mulf %54, %51 : vector<128x256xf32>
    %56 = arith.select %53, %51, %55 : vector<128x256xi1>, vector<128x256xf32>
    %c0_26 = arith.constant 0 : index
    %c0_27 = arith.constant 0 : index
    %c0_28 = arith.constant 0 : index
    %57 = vector.load %arg7[%c0_26, %c0_27, %c0_28] : memref<1x256x256xf32, #tpu.memory_space<vmem>>, vector<1x256x256xf32>
    %58 = vector.shape_cast %57 : vector<1x256x256xf32> to vector<256x256xf32>
    %cst_29 = arith.constant dense<0.000000e+00> : vector<128x256xf32>
    %59 = tpu.matmul %56, %58, %cst_29 {dimension_numbers = #tpu.dot_dimension_numbers<[1], [0], [0], [1], [0, 0, 1, 1], [], []>} : vector<128x256xf32>, vector<256x256xf32>, vector<128x256xf32> -> vector<128x256xf32>
    %c0_30 = arith.constant 0 : index
    %c0_31 = arith.constant 0 : index
    %c0_32 = arith.constant 0 : index
    %60 = vector.load %arg8[%c0_30, %c0_31, %c0_32] : memref<1x1x256xf32, #tpu.memory_space<vmem>>, vector<1x1x256xf32>
    %61 = vector.shape_cast %60 : vector<1x1x256xf32> to vector<1x256xf32>
    %62 = vector.broadcast %61 : vector<1x256xf32> to vector<128x256xf32>
    %63 = arith.addf %59, %62 : vector<128x256xf32>
    %cst_33 = arith.constant 0.000000e+00 : f32
    %64 = vector.broadcast %cst_33 : f32 to vector<128x256xf32>
    %65 = arith.cmpf ogt, %63, %64 : vector<128x256xf32>
    %cst_34 = arith.constant 0.00999999977 : f32
    %66 = vector.broadcast %cst_34 : f32 to vector<128x256xf32>
    %67 = arith.mulf %66, %63 : vector<128x256xf32>
    %68 = arith.select %65, %63, %67 : vector<128x256xi1>, vector<128x256xf32>
    %c1_i32_35 = arith.constant 1 : i32
    %69 = arith.cmpi slt, %arg0, %c1_i32_35 : i32
    %70 = arith.extui %69 : i1 to i32
    %c0_i32_36 = arith.constant 0 : i32
    %71 = arith.cmpi ne, %70, %c0_i32_36 : i32
    scf.if %71 {
      %75 = arith.truncf %68 : vector<128x256xf32> to vector<128x256xbf16>
      %76 = arith.index_cast %27 : i32 to index
      %77 = arith.index_cast %1 : i32 to index
      %c0_39 = arith.constant 0 : index
      %78 = vector.load %arg16[%76, %77, %c0_39] : memref<2x128x256xbf16, #tpu.memory_space<vmem>>, vector<1x128x256xbf16>
      %79 = vector.shape_cast %78 : vector<1x128x256xbf16> to vector<128x256xbf16>
      %80 = vector.shape_cast %75 : vector<128x256xbf16> to vector<1x128x256xbf16>
      tpu.vector_store %arg16[%76, %77, %c0_39], %80 {strides = array<i32>} : memref<2x128x256xbf16, #tpu.memory_space<vmem>>, vector<1x128x256xbf16>,
    } else {
    }
    %c1_i32_37 = arith.constant 1 : i32
    %72 = arith.cmpi eq, %arg0, %c1_i32_37 : i32
    %73 = arith.extui %72 : i1 to i32
    %c0_i32_38 = arith.constant 0 : i32
    %74 = arith.cmpi ne, %73, %c0_i32_38 : i32
    scf.if %74 {
      %c0_39 = arith.constant 0 : index
      %c0_40 = arith.constant 0 : index
      %75 = vector.load %arg9[%c0_39, %c0_40] : memref<256x256xf32, #tpu.memory_space<vmem>>, vector<256x256xf32>
      %cst_41 = arith.constant dense<0.000000e+00> : vector<128x256xf32>
      %76 = tpu.matmul %68, %75, %cst_41 {dimension_numbers = #tpu.dot_dimension_numbers<[1], [0], [0], [1], [0, 0, 1, 1], [], []>} : vector<128x256xf32>, vector<256x256xf32>, vector<128x256xf32> -> vector<128x256xf32>
      %c0_42 = arith.constant 0 : index
      %c0_43 = arith.constant 0 : index
      %77 = vector.load %arg10[%c0_42, %c0_43] : memref<1x256xf32, #tpu.memory_space<vmem>>, vector<1x256xf32>
      %78 = vector.broadcast %77 : vector<1x256xf32> to vector<128x256xf32>
      %79 = arith.addf %76, %78 : vector<128x256xf32>
      %cst_44 = arith.constant 0.000000e+00 : f32
      %80 = vector.broadcast %cst_44 : f32 to vector<128x256xf32>
      %81 = arith.cmpf ogt, %79, %80 : vector<128x256xf32>
      %cst_45 = arith.constant 0.00999999977 : f32
      %82 = vector.broadcast %cst_45 : f32 to vector<128x256xf32>
      %83 = arith.mulf %82, %79 : vector<128x256xf32>
      %84 = arith.select %81, %79, %83 : vector<128x256xi1>, vector<128x256xf32>
      %c0_46 = arith.constant 0 : index
      %c0_47 = arith.constant 0 : index
      %85 = vector.load %arg11[%c0_46, %c0_47] : memref<256x256xf32, #tpu.memory_space<vmem>>, vector<256x256xf32>
      %cst_48 = arith.constant dense<0.000000e+00> : vector<128x256xf32>
      %86 = tpu.matmul %84, %85, %cst_48 {dimension_numbers = #tpu.dot_dimension_numbers<[1], [0], [0], [1], [0, 0, 1, 1], [], []>} : vector<128x256xf32>, vector<256x256xf32>, vector<128x256xf32> -> vector<128x256xf32>
      %c0_49 = arith.constant 0 : index
      %c0_50 = arith.constant 0 : index
      %87 = vector.load %arg12[%c0_49, %c0_50] : memref<1x256xf32, #tpu.memory_space<vmem>>, vector<1x256xf32>
      %88 = vector.broadcast %87 : vector<1x256xf32> to vector<128x256xf32>
      %89 = arith.addf %86, %88 : vector<128x256xf32>
      %cst_51 = arith.constant 0.000000e+00 : f32
      %90 = vector.broadcast %cst_51 : f32 to vector<128x256xf32>
      %91 = arith.cmpf ogt, %89, %90 : vector<128x256xf32>
      %cst_52 = arith.constant 0.00999999977 : f32
      %92 = vector.broadcast %cst_52 : f32 to vector<128x256xf32>
      %93 = arith.mulf %92, %89 : vector<128x256xf32>
      %94 = arith.select %91, %89, %93 : vector<128x256xi1>, vector<128x256xf32>
      %c0_53 = arith.constant 0 : index
      %c0_54 = arith.constant 0 : index
      %95 = vector.load %arg13[%c0_53, %c0_54] : memref<1x256xf32, #tpu.memory_space<vmem>>, vector<1x256xf32>
      %96 = vector.broadcast %95 : vector<1x256xf32> to vector<128x256xf32>
      %97 = arith.mulf %94, %96 : vector<128x256xf32>
      %cst_55 = arith.constant dense<0.000000e+00> : vector<128xf32>
      %98 = vector.multi_reduction <add>, %97, %cst_55 [1] : vector<128x256xf32> to vector<128xf32>
      %99 = vector.shape_cast %98 : vector<128xf32> to vector<128x1xf32>
      %c0_56 = arith.constant 0 : index
      %c0_57 = arith.constant 0 : index
      %100 = vector.load %arg14[%c0_56, %c0_57] : memref<1x1xf32, #tpu.memory_space<vmem>>, vector<1x1xf32>
      %101 = vector.broadcast %100 : vector<1x1xf32> to vector<128x1xf32>
      %102 = arith.addf %99, %101 : vector<128x1xf32>
      %103 = arith.index_cast %1 : i32 to index
      %c0_58 = arith.constant 0 : index
      %104 = vector.load %arg15[%103, %c0_58] : memref<128x1xf32, #tpu.memory_space<vmem>>, vector<128x1xf32>
      tpu.vector_store %arg15[%103, %c0_58], %102 {strides = array<i32>} : memref<128x1xf32, #tpu.memory_space<vmem>>, vector<128x1xf32>,
    } else {
    }
    return
  }
  func.func @transform_0(%arg0: i32, %arg1: i32) -> i32 {
    %c0_i32 = arith.constant 0 : i32
    %c0_i32_0 = arith.constant 0 : i32
    return %c0_i32 : i32
  }
  func.func @transform_3(%arg0: i32, %arg1: i32) -> (i32, i32, i32) {
    %c0_i32 = arith.constant 0 : i32
    %c0_i32_0 = arith.constant 0 : i32
    %c0_i32_1 = arith.constant 0 : i32
    return %arg0, %c0_i32, %c0_i32_0 : i32, i32, i32
  }
  func.func @transform_4(%arg0: i32, %arg1: i32) -> (i32, i32, i32) {
    %c0_i32 = arith.constant 0 : i32
    %c0_i32_0 = arith.constant 0 : i32
    %c0_i32_1 = arith.constant 0 : i32
    return %arg0, %c0_i32, %c0_i32_0 : i32, i32, i32
  }
  func.func @transform_5(%arg0: i32, %arg1: i32) -> (i32, i32, i32) {
    %c0_i32 = arith.constant 0 : i32
    %c0_i32_0 = arith.constant 0 : i32
    %c0_i32_1 = arith.constant 0 : i32
    return %arg0, %c0_i32, %c0_i32_0 : i32, i32, i32
  }
  func.func @transform_6(%arg0: i32, %arg1: i32) -> (i32, i32, i32) {
    %c0_i32 = arith.constant 0 : i32
    %c0_i32_0 = arith.constant 0 : i32
    %c0_i32_1 = arith.constant 0 : i32
    return %arg0, %c0_i32, %c0_i32_0 : i32, i32, i32
  }
  func.func @transform_7(%arg0: i32, %arg1: i32) -> (i32, i32) {
    %c0_i32 = arith.constant 0 : i32
    %c0_i32_0 = arith.constant 0 : i32
    %c0_i32_1 = arith.constant 0 : i32
    return %c0_i32, %c0_i32_0 : i32, i32
  }
  func.func @transform_8(%arg0: i32, %arg1: i32) -> (i32, i32) {
    %c0_i32 = arith.constant 0 : i32
    %c0_i32_0 = arith.constant 0 : i32
    %c0_i32_1 = arith.constant 0 : i32
    return %c0_i32, %c0_i32_0 : i32, i32
  }
  func.func @transform_9(%arg0: i32, %arg1: i32) -> (i32, i32) {
    %c0_i32 = arith.constant 0 : i32
    %c0_i32_0 = arith.constant 0 : i32
    %c0_i32_1 = arith.constant 0 : i32
    return %c0_i32, %c0_i32_0 : i32, i32
  }
  func.func @transform_10(%arg0: i32, %arg1: i32) -> (i32, i32) {
    %c0_i32 = arith.constant 0 : i32
    %c0_i32_0 = arith.constant 0 : i32
    %c0_i32_1 = arith.constant 0 : i32
    return %c0_i32, %c0_i32_0 : i32, i32
  }
  func.func @transform_11(%arg0: i32, %arg1: i32) -> (i32, i32) {
    %c0_i32 = arith.constant 0 : i32
    %c0_i32_0 = arith.constant 0 : i32
    %c0_i32_1 = arith.constant 0 : i32
    return %c0_i32, %c0_i32_0 : i32, i32
  }
  func.func @transform_12(%arg0: i32, %arg1: i32) -> (i32, i32) {
    %c0_i32 = arith.constant 0 : i32
    %c0_i32_0 = arith.constant 0 : i32
    %c0_i32_1 = arith.constant 0 : i32
    return %c0_i32, %c0_i32_0 : i32, i32
  }
  func.func @transform_13(%arg0: i32, %arg1: i32) -> (i32, i32) {
    %c0_i32 = arith.constant 0 : i32
    %c0_i32_0 = arith.constant 0 : i32
    %c0_i32_1 = arith.constant 0 : i32
    return %c0_i32, %c0_i32_0 : i32, i32
  }
}

</mosaic_0001>

<llo_original>
// kernel: tpu_custom_call.1
$region0: #{tpu_custom_call.1}
  #allocation0 [shape = 'u32[]', space=smem, size = 0x4, offset = 0x4, fixed_abs, tag = 'smem constant byte address 0x4 - core index']
  #allocation1 [shape = 'u32[144,128]{1,0:T(1,128)}', space=vmem, size = 0x12000, scoped, tag = 'internal scratch']
  #allocation2 [shape = 'bf16[2,128,256]{2,1,0:T(16,128)(2,1)}', space=vmem, size = 0x20000, scoped, tag = 'scratch operand']
  #allocation3 [shape = 's32[1]{0}', space=sflag, size = 0x4, scoped, tag = 'scratch operand']
  #allocation4 [shape = 'bf16[128,128]{1,0:T(16,128)(2,1)}', space=vmem, size = 0x8000, scoped, tag = 'scratch operand']
  #allocation5 [shape = 'f32[1,1]{1,0:T(1,128)S(1)}', space=vmem, size = 0x200, scoped, tag = 'scoped memory for tpu_custom_call.1']
  #allocation15 [shape = 's32[]', space=sflag, size = 0x4, offset = 0, fixed_abs, tag = 'sflag constant byte address 0x0 - dummy sync flag']
  #allocation17 [shape = 's32[]', space=sflag, size = 0x4, offset = 0, fixed_abs, tag = 'sflag constant byte address 0x0 - dummy sync flag']
  #allocation18 [shape = 's32[]', space=sflag, size = 0x4, offset = 0, fixed_abs, tag = 'sflag constant byte address 0x0 - dummy sync flag']
  #allocation19 [shape = 'u32[]', space=smem, size = 0x4, offset = 0x44, fixed_abs, tag = 'smem constant byte address 0x44 - assertion arg 0']
  #allocation20 [shape = 'u32[]', space=smem, size = 0x4, offset = 0x48, fixed_abs, tag = 'smem constant byte address 0x48 - assertion arg 1']
  %s0 = inlined_call_operand.vmem [shape: f32[2], index: 0, kind: input, shape index: {}]
  %s1 = inlined_call_operand.hbm [shape: bf16[128,128], index: 1, kind: input, shape index: {}]
  %s2 = inlined_call_operand.hbm [shape: bf16[128,256], index: 2, kind: input, shape index: {}]
  %s3 = inlined_call_operand.hbm [shape: f32[2,256,256], index: 3, kind: input, shape index: {}]
  %s4 = inlined_call_operand.vmem [shape: f32[2,1,256], index: 4, kind: input, shape index: {}]
  %s5 = inlined_call_operand.hbm [shape: f32[2,256,256], index: 5, kind: input, shape index: {}]
  %s6 = inlined_call_operand.vmem [shape: f32[2,1,256], index: 6, kind: input, shape index: {}]
  %s7 = inlined_call_operand.hbm [shape: f32[256,256], index: 7, kind: input, shape index: {}]
  %s8 = inlined_call_operand.vmem [shape: f32[1,256], index: 8, kind: input, shape index: {}]
  %s9 = inlined_call_operand.hbm [shape: f32[256,256], index: 9, kind: input, shape index: {}]
  %s10 = inlined_call_operand.vmem [shape: f32[1,256], index: 10, kind: input, shape index: {}]
  %s11 = inlined_call_operand.vmem [shape: f32[1,256], index: 11, kind: input, shape index: {}]
  %s12 = inlined_call_operand.<no memory space> [shape: f32[1,1], index: 12, kind: input, shape index: {}]
  %s13 = inlined_call_operand.vmem [shape: f32[128,1], index: 13, kind: output, shape index: {}]
  %s14 = sld [smem:[#allocation0]]
  $region113: #{tpu_custom_call.1} parent=0
    _
  %s16 = ssub.s32 1, %s14
  %s17 = scalar_select 0, %s16, %s14
  %v18 = vstv %s12
  %19 = vst [vmem:[#allocation5] sm:$0x1] %v18
  $region1: #{tpu_custom_call.1} parent=0
    #allocation6 [shape = 'u8[512]{0}', space=smem, size = 0x200, scoped, tag = 'input window, operand 0, single buffered']
    #allocation7 [shape = 's32[2]{0}', space=sflag, size = 0x8, scoped, tag = 'scoped memory for tpu_custom_call.1']
    #allocation8 [shape = 's32[2]{0}', space=sflag, size = 0x8, scoped, tag = 'scoped memory for tpu_custom_call.1']
    #allocation9 [shape = 'u8[524288]{0}', space=vmem, size = 0x80000, scoped, tag = 'input window, operand 3']
    #allocation10 [shape = 'u8[524288]{0}', space=vmem, size = 0x80000, scoped, tag = 'input window, operand 5']
    #allocation11 [shape = 's32[2]{0}', space=sflag, size = 0x8, scoped, tag = 'scoped memory for tpu_custom_call.1']
    #allocation12 [shape = 'u8[262144]{0}', space=vmem, size = 0x40000, scoped, tag = 'input window, operand 7, single buffered']
    #allocation13 [shape = 'u8[262144]{0}', space=vmem, size = 0x40000, scoped, tag = 'input window, operand 9, single buffered']
    #allocation14 [shape = 's32[1]{0}', space=sflag, size = 0x4, scoped, tag = 'scoped memory for tpu_custom_call.1']
    %20 = vsyncpa [#allocation8], 0
    %21 = vsyncpa [#allocation7], 0
    %s22 = scalar_lea.sflag [#allocation7], 1
    %23 = vsyncpa %s22, 0
    %24 = vsyncpa [#allocation11], 0
    %s25 = scalar_lea.sflag [#allocation11], 1
    %26 = vsyncpa %s25, 0
    %27 = vsyncpa [#allocation14], 0
    loop: start=0, step=1, limit=4
    $region2: #{tpu_custom_call.1} parent=1 // loop_pre_header
      _
    $region3: #{tpu_custom_call.1} parent=1 // loop_header
      %s29 = sphi 0, %s33
      %p30 = scmp.ge.s32.totalorder %s29, 4
      %s36 = sphi 0, %s48
      %s37 = sphi 0, %s44
      %s38 = sphi 0, %s36
      %s39 = sphi 0, %s37
      %s40 = sphi 0, %s38
      %s41 = sphi 0, %s39
      %s49 = sphi 0, %s49
      %s51 = sphi 0, %s49
      %s52 = sphi 0, %s51
      %s66 = sphi 0, %s52
      %s72 = sphi 0, %s74
      %s75 = sphi 0, %s72
      %s76 = sphi 0, %s75
      %s92 = sphi 0, %s76
      %s98 = sphi 0, %s100
      %s101 = sphi 0, %s98
      %s102 = sphi 0, %s101
      %s118 = sphi 0, %s102
      %s124 = sphi 0, %s126
      %s127 = sphi 0, %s124
      %s128 = sphi 0, %s127
      %s144 = sphi 0, %s128
      %s150 = sphi 0, %s152
      %s153 = sphi 0, %s150
      %s154 = sphi 0, %s153
      %s170 = sphi 0, %s154
      %s174 = sphi 0, %s174
      %s176 = sphi 0, %s174
      %s177 = sphi 0, %s176
      %s191 = sphi 0, %s177
      %s195 = sphi 0, %s195
      %s197 = sphi 0, %s195
      %s198 = sphi 0, %s197
      %s212 = sphi 0, %s198
      %s216 = sphi 0, %s216
      %s218 = sphi 0, %s216
      %s219 = sphi 0, %s218
      %s233 = sphi 0, %s219
      %s237 = sphi 0, %s237
      %s239 = sphi 0, %s237
      %s240 = sphi 0, %s239
      %s254 = sphi 0, %s240
      %s258 = sphi 0, %s258
      %s260 = sphi 0, %s258
      %s261 = sphi 0, %s260
      %s275 = sphi 0, %s261
      %s279 = sphi 0, %s279
      %s281 = sphi 0, %s279
      %s282 = sphi 0, %s281
      %s296 = sphi 0, %s282
      %s300 = sphi 0, %s300
      %s302 = sphi 0, %s300
      %s303 = sphi 0, %s302
      %s317 = sphi 0, %s303
    $region4: #{tpu_custom_call.1} parent=1 // loop_header_branch
      %32 = sbr.rel (%p30) target = $region8
    $region5: #{tpu_custom_call.1} parent=1 // loop_body
      %s34 = ssub.s32 %s29, 1
      %s35 = ssub.s32 %s29, 2
      %s42 = sadd.s32 1, %s37
      %p43 = scmp.ge.s32.totalorder %s42, 1
      %s44 = scalar_select %p43, 0, %s42
      %s45 = sadd.s32 1, %s36
      %s46 = scalar_select %p43, %s45, %s36
      %p47 = scmp.ge.s32.totalorder %s46, 2
      %s48 = scalar_select %p47, 0, %s46
      %s50 = sadd.s32 %s49, 1
      %p53 = scmp.eq.s32.totalorder %s29, 1
      %p54 = scmp.ne.s32.totalorder %s49, %s51
      %p55 = scmp.eq.s32.totalorder %s29, 0
      %p56 = por %p54, %p55
      %p57 = scmp.ne.s32.totalorder %s49, %s51
      %p58 = scmp.eq.s32.totalorder %s34, 1
      %p59 = por %p57, %p58
      %p60 = scmp.ne.s32.totalorder %s51, %s52
      %p61 = scmp.eq.s32.totalorder %s34, 0
      %p62 = por %p60, %p61
      %p63 = scmp.ne.s32.totalorder %s51, %s52
      %p64 = scmp.eq.s32.totalorder %s35, 1
      %p65 = por %p63, %p64
      %p67 = scmp.ne.s32.totalorder %s52, %s66
      %p68 = scmp.eq.s32.totalorder %s35, 0
      %p69 = por %p67, %p68
      %s70 = ssub.s32 %s36, %s48
      %p71 = scmp.eq.s32.totalorder %s70, 0
      %s73 = sadd.s32 %s72, 1
      %s74 = scalar_select %p71, %s72, %s73
      %p77 = pneg %p71
      %p78 = scmp.eq.s32.totalorder %s29, 1
      %p79 = por %p77, %p78
      %p80 = scmp.ne.s32.totalorder %s72, %s75
      %p81 = scmp.eq.s32.totalorder %s29, 0
      %p82 = por %p80, %p81
      %p83 = scmp.ne.s32.totalorder %s72, %s75
      %p84 = scmp.eq.s32.totalorder %s34, 1
      %p85 = por %p83, %p84
      %p86 = scmp.ne.s32.totalorder %s75, %s76
      %p87 = scmp.eq.s32.totalorder %s34, 0
      %p88 = por %p86, %p87
      %p89 = scmp.ne.s32.totalorder %s75, %s76
      %p90 = scmp.eq.s32.totalorder %s35, 1
      %p91 = por %p89, %p90
      %p93 = scmp.ne.s32.totalorder %s76, %s92
      %p94 = scmp.eq.s32.totalorder %s35, 0
      %p95 = por %p93, %p94
      %s96 = ssub.s32 %s36, %s48
      %p97 = scmp.eq.s32.totalorder %s96, 0
      %s99 = sadd.s32 %s98, 1
      %s100 = scalar_select %p97, %s98, %s99
      %p103 = pneg %p97
      %p104 = scmp.eq.s32.totalorder %s29, 1
      %p105 = por %p103, %p104
      %p106 = scmp.ne.s32.totalorder %s98, %s101
      %p107 = scmp.eq.s32.totalorder %s29, 0
      %p108 = por %p106, %p107
      %p109 = scmp.ne.s32.totalorder %s98, %s101
      %p110 = scmp.eq.s32.totalorder %s34, 1
      %p111 = por %p109, %p110
      %p112 = scmp.ne.s32.totalorder %s101, %s102
      %p113 = scmp.eq.s32.totalorder %s34, 0
      %p114 = por %p112, %p113
      %p115 = scmp.ne.s32.totalorder %s101, %s102
      %p116 = scmp.eq.s32.totalorder %s35, 1
      %p117 = por %p115, %p116
      %p119 = scmp.ne.s32.totalorder %s102, %s118
      %p120 = scmp.eq.s32.totalorder %s35, 0
      %p121 = por %p119, %p120
      %s122 = ssub.s32 %s36, %s48
      %p123 = scmp.eq.s32.totalorder %s122, 0
      %s125 = sadd.s32 %s124, 1
      %s126 = scalar_select %p123, %s124, %s125
      %p129 = pneg %p123
      %p130 = scmp.eq.s32.totalorder %s29, 1
      %p131 = por %p129, %p130
      %p132 = scmp.ne.s32.totalorder %s124, %s127
      %p133 = scmp.eq.s32.totalorder %s29, 0
      %p134 = por %p132, %p133
      %p135 = scmp.ne.s32.totalorder %s124, %s127
      %p136 = scmp.eq.s32.totalorder %s34, 1
      %p137 = por %p135, %p136
      %p138 = scmp.ne.s32.totalorder %s127, %s128
      %p139 = scmp.eq.s32.totalorder %s34, 0
      %p140 = por %p138, %p139
      %p141 = scmp.ne.s32.totalorder %s127, %s128
      %p142 = scmp.eq.s32.totalorder %s35, 1
      %p143 = por %p141, %p142
      %p145 = scmp.ne.s32.totalorder %s128, %s144
      %p146 = scmp.eq.s32.totalorder %s35, 0
      %p147 = por %p145, %p146
      %s148 = ssub.s32 %s36, %s48
      %p149 = scmp.eq.s32.totalorder %s148, 0
      %s151 = sadd.s32 %s150, 1
      %s152 = scalar_select %p149, %s150, %s151
      %p155 = pneg %p149
      %p156 = scmp.eq.s32.totalorder %s29, 1
      %p157 = por %p155, %p156
      %p158 = scmp.ne.s32.totalorder %s150, %s153
      %p159 = scmp.eq.s32.totalorder %s29, 0
      %p160 = por %p158, %p159
      %p161 = scmp.ne.s32.totalorder %s150, %s153
      %p162 = scmp.eq.s32.totalorder %s34, 1
      %p163 = por %p161, %p162
      %p164 = scmp.ne.s32.totalorder %s153, %s154
      %p165 = scmp.eq.s32.totalorder %s34, 0
      %p166 = por %p164, %p165
      %p167 = scmp.ne.s32.totalorder %s153, %s154
      %p168 = scmp.eq.s32.totalorder %s35, 1
      %p169 = por %p167, %p168
      %p171 = scmp.ne.s32.totalorder %s154, %s170
      %p172 = scmp.eq.s32.totalorder %s35, 0
      %p173 = por %p171, %p172
      %s175 = sadd.s32 %s174, 1
      %p178 = scmp.eq.s32.totalorder %s29, 1
      %p179 = scmp.ne.s32.totalorder %s174, %s176
      %p180 = scmp.eq.s32.totalorder %s29, 0
      %p181 = por %p179, %p180
      %p182 = scmp.ne.s32.totalorder %s174, %s176
      %p183 = scmp.eq.s32.totalorder %s34, 1
      %p184 = por %p182, %p183
      %p185 = scmp.ne.s32.totalorder %s176, %s177
      %p186 = scmp.eq.s32.totalorder %s34, 0
      %p187 = por %p185, %p186
      %p188 = scmp.ne.s32.totalorder %s176, %s177
      %p189 = scmp.eq.s32.totalorder %s35, 1
      %p190 = por %p188, %p189
      %p192 = scmp.ne.s32.totalorder %s177, %s191
      %p193 = scmp.eq.s32.totalorder %s35, 0
      %p194 = por %p192, %p193
      %s196 = sadd.s32 %s195, 1
      %p199 = scmp.eq.s32.totalorder %s29, 1
      %p200 = scmp.ne.s32.totalorder %s195, %s197
      %p201 = scmp.eq.s32.totalorder %s29, 0
      %p202 = por %p200, %p201
      %p203 = scmp.ne.s32.totalorder %s195, %s197
      %p204 = scmp.eq.s32.totalorder %s34, 1
      %p205 = por %p203, %p204
      %p206 = scmp.ne.s32.totalorder %s197, %s198
      %p207 = scmp.eq.s32.totalorder %s34, 0
      %p208 = por %p206, %p207
      %p209 = scmp.ne.s32.totalorder %s197, %s198
      %p210 = scmp.eq.s32.totalorder %s35, 1
      %p211 = por %p209, %p210
      %p213 = scmp.ne.s32.totalorder %s198, %s212
      %p214 = scmp.eq.s32.totalorder %s35, 0
      %p215 = por %p213, %p214
      %s217 = sadd.s32 %s216, 1
      %p220 = scmp.eq.s32.totalorder %s29, 1
      %p221 = scmp.ne.s32.totalorder %s216, %s218
      %p222 = scmp.eq.s32.totalorder %s29, 0
      %p223 = por %p221, %p222
      %p224 = scmp.ne.s32.totalorder %s216, %s218
      %p225 = scmp.eq.s32.totalorder %s34, 1
      %p226 = por %p224, %p225
      %p227 = scmp.ne.s32.totalorder %s218, %s219
      %p228 = scmp.eq.s32.totalorder %s34, 0
      %p229 = por %p227, %p228
      %p230 = scmp.ne.s32.totalorder %s218, %s219
      %p231 = scmp.eq.s32.totalorder %s35, 1
      %p232 = por %p230, %p231
      %p234 = scmp.ne.s32.totalorder %s219, %s233
      %p235 = scmp.eq.s32.totalorder %s35, 0
      %p236 = por %p234, %p235
      %s238 = sadd.s32 %s237, 1
      %p241 = scmp.eq.s32.totalorder %s29, 1
      %p242 = scmp.ne.s32.totalorder %s237, %s239
      %p243 = scmp.eq.s32.totalorder %s29, 0
      %p244 = por %p242, %p243
      %p245 = scmp.ne.s32.totalorder %s237, %s239
      %p246 = scmp.eq.s32.totalorder %s34, 1
      %p247 = por %p245, %p246
      %p248 = scmp.ne.s32.totalorder %s239, %s240
      %p249 = scmp.eq.s32.totalorder %s34, 0
      %p250 = por %p248, %p249
      %p251 = scmp.ne.s32.totalorder %s239, %s240
      %p252 = scmp.eq.s32.totalorder %s35, 1
      %p253 = por %p251, %p252
      %p255 = scmp.ne.s32.totalorder %s240, %s254
      %p256 = scmp.eq.s32.totalorder %s35, 0
      %p257 = por %p255, %p256
      %s259 = sadd.s32 %s258, 1
      %p262 = scmp.eq.s32.totalorder %s29, 1
      %p263 = scmp.ne.s32.totalorder %s258, %s260
      %p264 = scmp.eq.s32.totalorder %s29, 0
      %p265 = por %p263, %p264
      %p266 = scmp.ne.s32.totalorder %s258, %s260
      %p267 = scmp.eq.s32.totalorder %s34, 1
      %p268 = por %p266, %p267
      %p269 = scmp.ne.s32.totalorder %s260, %s261
      %p270 = scmp.eq.s32.totalorder %s34, 0
      %p271 = por %p269, %p270
      %p272 = scmp.ne.s32.totalorder %s260, %s261
      %p273 = scmp.eq.s32.totalorder %s35, 1
      %p274 = por %p272, %p273
      %p276 = scmp.ne.s32.totalorder %s261, %s275
      %p277 = scmp.eq.s32.totalorder %s35, 0
      %p278 = por %p276, %p277
      %s280 = sadd.s32 %s279, 1
      %p283 = scmp.eq.s32.totalorder %s29, 1
      %p284 = scmp.ne.s32.totalorder %s279, %s281
      %p285 = scmp.eq.s32.totalorder %s29, 0
      %p286 = por %p284, %p285
      %p287 = scmp.ne.s32.totalorder %s279, %s281
      %p288 = scmp.eq.s32.totalorder %s34, 1
      %p289 = por %p287, %p288
      %p290 = scmp.ne.s32.totalorder %s281, %s282
      %p291 = scmp.eq.s32.totalorder %s34, 0
      %p292 = por %p290, %p291
      %p293 = scmp.ne.s32.totalorder %s281, %s282
      %p294 = scmp.eq.s32.totalorder %s35, 1
      %p295 = por %p293, %p294
      %p297 = scmp.ne.s32.totalorder %s282, %s296
      %p298 = scmp.eq.s32.totalorder %s35, 0
      %p299 = por %p297, %p298
      %s301 = sadd.s32 %s300, 1
      %p304 = scmp.eq.s32.totalorder %s29, 1
      %p305 = scmp.ne.s32.totalorder %s300, %s302
      %p306 = scmp.eq.s32.totalorder %s29, 0
      %p307 = por %p305, %p306
      %p308 = scmp.ne.s32.totalorder %s300, %s302
      %p309 = scmp.eq.s32.totalorder %s34, 1
      %p310 = por %p308, %p309
      %p311 = scmp.ne.s32.totalorder %s302, %s303
      %p312 = scmp.eq.s32.totalorder %s34, 0
      %p313 = por %p311, %p312
      %p314 = scmp.ne.s32.totalorder %s302, %s303
      %p315 = scmp.eq.s32.totalorder %s35, 1
      %p316 = por %p314, %p315
      %p318 = scmp.ne.s32.totalorder %s303, %s317
      %p319 = scmp.eq.s32.totalorder %s35, 0
      %p320 = por %p318, %p319
      %p321 = scmp.le.s32.totalorder 1, %s29
      %p322 = scmp.lt.s32.totalorder %s29, 3
      %p323 = pnand %p321, %p322
      %p324 = pneg %p323
      // Predicated region
      $region9: #{tpu_custom_call.1} parent=5 // pred_check
        _
      $region10: #{tpu_custom_call.1} parent=5 // pred_check_branch
        %326 = sbr.rel (%p323) target = $region12
      $region11: #{tpu_custom_call.1} parent=5 // pred_region
        %s327 = ssub.s32 %s29, 1
        // Predicated region
        $region13: #{tpu_custom_call.1} parent=11 // pred_check
          %p328 = pneg %p62
        $region14: #{tpu_custom_call.1} parent=11 // pred_check_branch
          %330 = sbr.rel (%p328) target = $region16
        $region15: #{tpu_custom_call.1} parent=11 // pred_region
          %s332 = ssub.s32 16, 16
          %333 = vsyncadd [#allocation8], %s332
          %s335 = sshll.u32 %s0, 4
          %s336 = int_to_ptr.vmem [resolvable:$true] %s335
          %338 = dma.vmem_to_smem %s336, 16, [#allocation6], [#allocation8]
        $region16: #{tpu_custom_call.1} parent=11 // pred_fallthru
          _
        // Predicated region
        $region17: #{tpu_custom_call.1} parent=11 // pred_check
          %p339 = pneg %p187
        $region18: #{tpu_custom_call.1} parent=11 // pred_check_branch
          %341 = sbr.rel (%p339) target = $region20
        $region19: #{tpu_custom_call.1} parent=11 // pred_region
          %s343 = ssub.s32 8192, 8192
          %344 = vsyncadd [#allocation11], %s343
          %s345 = sshll.u32 [#allocation12], 4
          %s346 = int_to_ptr.vmem [resolvable:$true] %s345
          %351 = dma.hbm_to_vmem [thread:$0]  %s7, 8192, %s346, [#allocation11], 256, 256, 16
        $region20: #{tpu_custom_call.1} parent=11 // pred_fallthru
          _
        // Predicated region
        $region21: #{tpu_custom_call.1} parent=11 // pred_check
          %p352 = pneg %p208
        $region22: #{tpu_custom_call.1} parent=11 // pred_check_branch
          %354 = sbr.rel (%p352) target = $region24
        $region23: #{tpu_custom_call.1} parent=11 // pred_region
          _
        $region24: #{tpu_custom_call.1} parent=11 // pred_fallthru
          _
        // Predicated region
        $region25: #{tpu_custom_call.1} parent=11 // pred_check
          %p355 = pneg %p229
        $region26: #{tpu_custom_call.1} parent=11 // pred_check_branch
          %357 = sbr.rel (%p355) target = $region28
        $region27: #{tpu_custom_call.1} parent=11 // pred_region
          %s359 = ssub.s32 8192, 8192
          %360 = vsyncadd [#allocation14], %s359
          %s361 = sshll.u32 [#allocation13], 4
          %s362 = int_to_ptr.vmem [resolvable:$true] %s361
          %367 = dma.hbm_to_vmem [thread:$0]  %s9, 8192, %s362, [#allocation14], 256, 256, 16
        $region28: #{tpu_custom_call.1} parent=11 // pred_fallthru
          _
        // Predicated region
        $region29: #{tpu_custom_call.1} parent=11 // pred_check
          %p368 = pneg %p250
        $region30: #{tpu_custom_call.1} parent=11 // pred_check_branch
          %370 = sbr.rel (%p368) target = $region32
        $region31: #{tpu_custom_call.1} parent=11 // pred_region
          _
        $region32: #{tpu_custom_call.1} parent=11 // pred_fallthru
          _
        // Predicated region
        $region33: #{tpu_custom_call.1} parent=11 // pred_check
          %p371 = pneg %p271
        $region34: #{tpu_custom_call.1} parent=11 // pred_check_branch
          %373 = sbr.rel (%p371) target = $region36
        $region35: #{tpu_custom_call.1} parent=11 // pred_region
          _
        $region36: #{tpu_custom_call.1} parent=11 // pred_fallthru
          _
        // Predicated region
        $region37: #{tpu_custom_call.1} parent=11 // pred_check
          %p374 = pneg %p292
        $region38: #{tpu_custom_call.1} parent=11 // pred_check_branch
          %376 = sbr.rel (%p374) target = $region40
        $region39: #{tpu_custom_call.1} parent=11 // pred_region
          _
        $region40: #{tpu_custom_call.1} parent=11 // pred_fallthru
          _
      $region12: #{tpu_custom_call.1} parent=5 // pred_fallthru
        _
      %p377 = scmp.lt.s32.totalorder %s29, 2
      // Predicated region
      $region41: #{tpu_custom_call.1} parent=5 // pred_check
        %p378 = pneg %p377
      $region42: #{tpu_custom_call.1} parent=5 // pred_check_branch
        %380 = sbr.rel (%p378) target = $region44
      $region43: #{tpu_custom_call.1} parent=5 // pred_region
        // Predicated region
        $region45: #{tpu_custom_call.1} parent=43 // pred_check
          %p381 = pneg %p82
        $region46: #{tpu_custom_call.1} parent=43 // pred_check_branch
          %383 = sbr.rel (%p381) target = $region48
        $region47: #{tpu_custom_call.1} parent=43 // pred_region
          %s384 = sand.u32 %s72, 1
          %s385 = scalar_lea.sflag [#allocation7], %s384
          %s386 = sand.u32 %s72, 1
          %s387 = smul.addr %s386, 512
          %s388 = scalar_lea.vmem [#allocation9], %s387
          %s390 = ssub.s32 8192, 8192
          %391 = vsyncadd %s385, %s390
          %s392 = smul.addr %s36, 64
          %s393 = smul.addr %s392, 128
          %s394 = scalar_lea.hbm %s3, %s393
          %s395 = sshll.u32 %s388, 4
          %s396 = int_to_ptr.vmem [resolvable:$true] %s395
          %401 = dma.hbm_to_vmem [thread:$0]  %s394, 8192, %s396, %s385, 256, 256, 16
        $region48: #{tpu_custom_call.1} parent=43 // pred_fallthru
          _
        // Predicated region
        $region49: #{tpu_custom_call.1} parent=43 // pred_check
          %p402 = pneg %p108
        $region50: #{tpu_custom_call.1} parent=43 // pred_check_branch
          %404 = sbr.rel (%p402) target = $region52
        $region51: #{tpu_custom_call.1} parent=43 // pred_region
          %p405 = scmp.lt.s32.totalorder %s36, 1
          %s406 = scalar_select %p405, %s36, 1
          %s407 = smul.addr %s406, 2
          %s408 = scalar_lea.vmem %s4, %s407
        $region52: #{tpu_custom_call.1} parent=43 // pred_fallthru
          _
        // Predicated region
        $region53: #{tpu_custom_call.1} parent=43 // pred_check
          %p409 = pneg %p134
        $region54: #{tpu_custom_call.1} parent=43 // pred_check_branch
          %411 = sbr.rel (%p409) target = $region56
        $region55: #{tpu_custom_call.1} parent=43 // pred_region
          %s412 = sand.u32 %s29, 1
          %s413 = scalar_lea.sflag [#allocation11], %s412
          %s414 = sand.u32 %s124, 1
          %s415 = smul.addr %s414, 512
          %s416 = scalar_lea.vmem [#allocation10], %s415
          %s418 = ssub.s32 8192, 8192
          %419 = vsyncadd %s413, %s418
          %s420 = smul.addr %s36, 64
          %s421 = smul.addr %s420, 128
          %s422 = scalar_lea.hbm %s5, %s421
          %s423 = sshll.u32 %s416, 4
          %s424 = int_to_ptr.vmem [resolvable:$true] %s423
          %429 = dma.hbm_to_vmem [thread:$0]  %s422, 8192, %s424, %s413, 256, 256, 16
        $region56: #{tpu_custom_call.1} parent=43 // pred_fallthru
          _
        // Predicated region
        $region57: #{tpu_custom_call.1} parent=43 // pred_check
          %p430 = pneg %p160
        $region58: #{tpu_custom_call.1} parent=43 // pred_check_branch
          %432 = sbr.rel (%p430) target = $region60
        $region59: #{tpu_custom_call.1} parent=43 // pred_region
          %p433 = scmp.lt.s32.totalorder %s36, 1
          %s434 = scalar_select %p433, %s36, 1
          %s435 = smul.addr %s434, 2
          %s436 = scalar_lea.vmem %s6, %s435
        $region60: #{tpu_custom_call.1} parent=43 // pred_fallthru
          _
      $region44: #{tpu_custom_call.1} parent=5 // pred_fallthru
        _
      %p437 = scmp.le.s32.totalorder 1, %s29
      %p438 = scmp.lt.s32.totalorder %s29, 3
      %p439 = pnand %p437, %p438
      %p440 = pneg %p439
      // Predicated region
      $region61: #{tpu_custom_call.1} parent=5 // pred_check
        _
      $region62: #{tpu_custom_call.1} parent=5 // pred_check_branch
        %442 = sbr.rel (%p439) target = $region64
      $region63: #{tpu_custom_call.1} parent=5 // pred_region
        %s443 = ssub.s32 %s29, 1
        // Predicated region
        $region65: #{tpu_custom_call.1} parent=63 // pred_check
          %p444 = pneg %p62
        $region66: #{tpu_custom_call.1} parent=63 // pred_check_branch
          %446 = sbr.rel (%p444) target = $region68
        $region67: #{tpu_custom_call.1} parent=63 // pred_region
          %447 = dma.done [#allocation8], 16
        $region68: #{tpu_custom_call.1} parent=63 // pred_fallthru
          _
        %s448 = sand.u32 %s75, 1
        %s449 = scalar_lea.sflag [#allocation7], %s448
        %s450 = sand.u32 %s75, 1
        %s451 = smul.addr %s450, 512
        %s452 = scalar_lea.vmem [#allocation9], %s451
        // Predicated region
        $region69: #{tpu_custom_call.1} parent=63 // pred_check
          %p453 = pneg %p88
        $region70: #{tpu_custom_call.1} parent=63 // pred_check_branch
          %455 = sbr.rel (%p453) target = $region72
        $region71: #{tpu_custom_call.1} parent=63 // pred_region
          %456 = dma.done %s449, 8192
        $region72: #{tpu_custom_call.1} parent=63 // pred_fallthru
          _
        %s457 = sand.u32 %s34, 1
        %s458 = scalar_lea.sflag [#allocation11], %s457
        %s459 = sand.u32 %s127, 1
        %s460 = smul.addr %s459, 512
        %s461 = scalar_lea.vmem [#allocation10], %s460
        // Predicated region
        $region73: #{tpu_custom_call.1} parent=63 // pred_check
          %p462 = pneg %p140
        $region74: #{tpu_custom_call.1} parent=63 // pred_check_branch
          %464 = sbr.rel (%p462) target = $region76
        $region75: #{tpu_custom_call.1} parent=63 // pred_region
          %465 = dma.done %s458, 8192
        $region76: #{tpu_custom_call.1} parent=63 // pred_fallthru
          _
        // Predicated region
        $region77: #{tpu_custom_call.1} parent=63 // pred_check
          %p466 = pneg %p187
        $region78: #{tpu_custom_call.1} parent=63 // pred_check_branch
          %468 = sbr.rel (%p466) target = $region80
        $region79: #{tpu_custom_call.1} parent=63 // pred_region
          %469 = dma.done [#allocation11], 8192
        $region80: #{tpu_custom_call.1} parent=63 // pred_fallthru
          _
        // Predicated region
        $region81: #{tpu_custom_call.1} parent=63 // pred_check
          %p470 = pneg %p229
        $region82: #{tpu_custom_call.1} parent=63 // pred_check_branch
          %472 = sbr.rel (%p470) target = $region84
        $region83: #{tpu_custom_call.1} parent=63 // pred_region
          %473 = dma.done [#allocation14], 8192
        $region84: #{tpu_custom_call.1} parent=63 // pred_fallthru
          _
        %474 = sfence
        %p475 = pneg %p62
        %p476 = pneg %p59
        %s477 = sand.u32 %s75, 1
        %s478 = scalar_lea.sflag [#allocation7], %s477
        %s479 = sand.u32 %s75, 1
        %s480 = smul.addr %s479, 512
        %s481 = scalar_lea.vmem [#allocation9], %s480
        %p482 = pneg %p88
        %p483 = pneg %p85
        %p484 = scmp.lt.s32.totalorder %s38, 1
        %s485 = scalar_select %p484, %s38, 1
        %s486 = smul.addr %s485, 2
        %s487 = scalar_lea.vmem %s4, %s486
        %p488 = pneg %p114
        %p489 = pneg %p111
        %s490 = sand.u32 %s34, 1
        %s491 = scalar_lea.sflag [#allocation11], %s490
        %s492 = sand.u32 %s127, 1
        %s493 = smul.addr %s492, 512
        %s494 = scalar_lea.vmem [#allocation10], %s493
        %p495 = pneg %p140
        %p496 = pneg %p137
        %p497 = scmp.lt.s32.totalorder %s38, 1
        %s498 = scalar_select %p497, %s38, 1
        %s499 = smul.addr %s498, 2
        %s500 = scalar_lea.vmem %s6, %s499
        %p501 = pneg %p166
        %p502 = pneg %p163
        %p503 = pneg %p187
        %p504 = pneg %p184
        %p505 = pneg %p208
        %p506 = pneg %p205
        %p507 = pneg %p229
        %p508 = pneg %p226
        %p509 = pneg %p250
        %p510 = pneg %p247
        %p511 = pneg %p271
        %p512 = pneg %p268
        %p513 = pneg %p292
        %p514 = pneg %p289
        %p515 = pneg %p313
        %p516 = pneg %p310
        %p517 = scmp.lt.s32.totalorder %s38, 1
        %s518 = scalar_select %p517, %s38, 1
        %s519 = smul.addr %s518, 2
        %s520 = scalar_lea.vmem %s4, %s519
        %p521 = scmp.lt.s32.totalorder %s38, 1
        %s522 = scalar_select %p521, %s38, 1
        %s523 = smul.addr %s522, 2
        %s524 = scalar_lea.vmem %s6, %s523
        %s526 = smul.u32 %s39, 128
        %p527 = scmp.eq.s32.totalorder %s38, 0
        %p528 = scmp.eq.s32.totalorder %s39, 0
        %p529 = pnand %p527, %p528
        %p530 = pneg %p529
        // Predicated region
        $region85: #{tpu_custom_call.1} parent=63 // pred_check
          _
        $region86: #{tpu_custom_call.1} parent=63 // pred_check_branch
          %532 = sbr.rel (%p529) target = $region88
        $region87: #{tpu_custom_call.1} parent=63 // pred_region
          #allocation16 [shape = 'u32[9]{0}', space=smem, size = 0x24, scoped, tag = 'DMA stride descriptor']
          %s534 = sshll.u32 1, 14
          %s535 = sxor.u32 4294967295, %s534
          %s537 = sld [smem:[#allocation0]]
          %s538 = sadd.s32 2, %s537
          %s540 = sshll.u32 7, 26
          %s541 = sxor.u32 4294967295, %s540
          %s542 = sand.u32 0, %s541
          %s543 = sshll.u32 %s538, 26
          %s544 = sor.u32 %s542, %s543
          %s545 = sshll.u32 [#allocation2], 4
          %s546 = int_to_ptr.vmem [resolvable:$true] %s545
          %549 = sst [smem:[#allocation16]] 256
          %s550 = scalar_lea.smem [#allocation16], 1
          %551 = sst [smem:[%s550]] 256
          %s552 = scalar_lea.smem [#allocation16], 2
          %553 = sst [smem:[%s552]] 2
          %s554 = scalar_lea.smem [#allocation16], 3
          %555 = sst [smem:[%s554]] 64
          %s556 = scalar_lea.smem [#allocation16], 4
          %557 = sst [smem:[%s556]] 128
          %s558 = scalar_lea.smem [#allocation16], 5
          %559 = sst [smem:[%s558]] 2
          %s560 = scalar_lea.smem [#allocation16], 6
          %561 = sst [smem:[%s560]] 128
          %s562 = scalar_lea.smem [#allocation16], 7
          %563 = sst [smem:[%s562]] 64
          %s564 = scalar_lea.smem [#allocation16], 8
          %565 = sst [smem:[%s564]] 4
          %567 = dma.general %s2, 2048, %s546, [#allocation3], [#allocation15], [#allocation16], %s544, 0
          %s568 = smul.u32 4, 16
          %s569 = smul.u32 %s568, 2
          %s570 = sshll.u32 %s569, 4
          %571 = dma.done [#allocation3], %s570
          // Predicated region
          $region89: #{tpu_custom_call.1} parent=87 // pred_check
            _
          $region90: #{tpu_custom_call.1} parent=87 // pred_check_branch
            %573 = sbr.rel target = $region92
          $region91: #{tpu_custom_call.1} parent=87 // pred_region
            %574 = sst [smem:[#allocation19]] [#allocation18]
            %575 = sst [smem:[#allocation20]] [#allocation17]
          $region92: #{tpu_custom_call.1} parent=87 // pred_fallthru
            _
          %577 = shalt.err (0)
          %s579 = sshll.u32 [#allocation4], 4
          %s580 = int_to_ptr.vmem [resolvable:$true] %s579
          %582 = dma.hbm_to_vmem [thread:$0]  %s1, 1024, %s580, [#allocation3]
          %s583 = smul.u32 %s568, 1
          %s584 = sshll.u32 %s583, 4
          %585 = dma.done [#allocation3], %s584
        $region88: #{tpu_custom_call.1} parent=63 // pred_fallthru
          _
        %p586 = scmp.lt.s32.totalorder %s38, 0
        %s587 = ssub.s32 0, %s38
        %s588 = scalar_select %p586, %s587, %s38
        %s589 = sand.u32 %s588, 1
        %s590 = ssub.s32 0, %s589
        %s591 = scalar_select %p586, %s590, %s589
        %p592 = scmp.ne.s32.totalorder %s591, 0
        %p593 = scmp.lt.s32.totalorder %s591, 0
        %p594 = pnand %p593, %p592
        %p595 = pneg %p594
        %s596 = sadd.s32 %s591, 2
        %s597 = scalar_select %p595, %s596, %s591
        %s598 = sadd.s32 %s38, 1
        %p599 = scmp.lt.s32.totalorder %s598, 0
        %s600 = ssub.s32 0, %s598
        %s601 = scalar_select %p599, %s600, %s598
        %s602 = sand.u32 %s601, 1
        %s603 = ssub.s32 0, %s602
        %s604 = scalar_select %p599, %s603, %s602
        %p605 = scmp.ne.s32.totalorder %s604, 0
        %p606 = scmp.lt.s32.totalorder %s604, 0
        %p607 = pnand %p606, %p605
        %p608 = pneg %p607
        %s609 = sadd.s32 %s604, 2
        %s610 = scalar_select %p608, %s609, %s604
        %s611 = sshra.s32 %s526, 4
        %s612 = sand.u32 %s526, 15
        %s613 = smul.addr %s611, 8
        %s614 = scalar_lea.vmem [#allocation4], %s613
        %v615 = vld [vmem:[%s614] sm:$0xff]
        %v616 = vld [vmem:[%s614 + $0x8] sm:$0xff]
        %v617 = vld [vmem:[%s614 + $0x10] sm:$0xff]
        %v618 = vld [vmem:[%s614 + $0x18] sm:$0xff]
        %v619 = vld [vmem:[%s614 + $0x20] sm:$0xff]
        %v620 = vld [vmem:[%s614 + $0x28] sm:$0xff]
        %v621 = vld [vmem:[%s614 + $0x30] sm:$0xff]
        %v622 = vld [vmem:[%s614 + $0x38] sm:$0xff]
        %s623 = smul.u32 %s597, 16
        %s624 = smul.addr %s623, 8
        %s625 = scalar_lea.vmem [#allocation2], %s624
        %v626 = vld [vmem:[%s625] sm:$0xff]
        %v627 = vld [vmem:[%s625 + $0x8] sm:$0xff]
        %v628 = vld [vmem:[%s625 + $0x10] sm:$0xff]
        %v629 = vld [vmem:[%s625 + $0x18] sm:$0xff]
        %v630 = vld [vmem:[%s625 + $0x20] sm:$0xff]
        %v631 = vld [vmem:[%s625 + $0x28] sm:$0xff]
        %v632 = vld [vmem:[%s625 + $0x30] sm:$0xff]
        %v633 = vld [vmem:[%s625 + $0x38] sm:$0xff]
        %v634 = vld [vmem:[%s625 + $0x40] sm:$0xff]
        %v635 = vld [vmem:[%s625 + $0x48] sm:$0xff]
        %v636 = vld [vmem:[%s625 + $0x50] sm:$0xff]
        %v637 = vld [vmem:[%s625 + $0x58] sm:$0xff]
        %v638 = vld [vmem:[%s625 + $0x60] sm:$0xff]
        %v639 = vld [vmem:[%s625 + $0x68] sm:$0xff]
        %v640 = vld [vmem:[%s625 + $0x70] sm:$0xff]
        %v641 = vld [vmem:[%s625 + $0x78] sm:$0xff]
        %s642 = smul.u32 %s611, 2
        %s643 = sadd.s32 %s642, %s623
        %s644 = smul.addr %s643, 8
        %s645 = scalar_lea.vmem [#allocation2], %s644
        %v646 = vld [vmem:[%s645] sm:$0xff]
        %v647 = vld [vmem:[%s645 + $0x8] sm:$0xff]
        %v648 = vld [vmem:[%s645 + $0x10] sm:$0xff]
        %v649 = vld [vmem:[%s645 + $0x18] sm:$0xff]
        %v650 = vld [vmem:[%s645 + $0x20] sm:$0xff]
        %v651 = vld [vmem:[%s645 + $0x28] sm:$0xff]
        %v652 = vld [vmem:[%s645 + $0x30] sm:$0xff]
        %v653 = vld [vmem:[%s645 + $0x38] sm:$0xff]
        %v654 = vld [vmem:[%s645 + $0x40] sm:$0xff]
        %v655 = vld [vmem:[%s645 + $0x48] sm:$0xff]
        %v656 = vld [vmem:[%s645 + $0x50] sm:$0xff]
        %v657 = vld [vmem:[%s645 + $0x58] sm:$0xff]
        %v658 = vld [vmem:[%s645 + $0x60] sm:$0xff]
        %v659 = vld [vmem:[%s645 + $0x68] sm:$0xff]
        %v660 = vld [vmem:[%s645 + $0x70] sm:$0xff]
        %v661 = vld [vmem:[%s645 + $0x78] sm:$0xff]
        %v662 = vunpack.c.l.bf16 %v646
        %v663 = vunpack.c.l.bf16 %v647
        %v664 = vunpack.c.h.bf16 %v646
        %v665 = vunpack.c.h.bf16 %v647
        %v666 = vunpack.c.l.bf16 %v648
        %v667 = vunpack.c.l.bf16 %v649
        %v668 = vunpack.c.h.bf16 %v648
        %v669 = vunpack.c.h.bf16 %v649
        %v670 = vunpack.c.l.bf16 %v650
        %v671 = vunpack.c.l.bf16 %v651
        %v672 = vunpack.c.h.bf16 %v650
        %v673 = vunpack.c.h.bf16 %v651
        %v674 = vunpack.c.l.bf16 %v652
        %v675 = vunpack.c.l.bf16 %v653
        %v676 = vunpack.c.h.bf16 %v652
        %v677 = vunpack.c.h.bf16 %v653
        %v678 = vunpack.c.l.bf16 %v654
        %v679 = vunpack.c.l.bf16 %v655
        %v680 = vunpack.c.h.bf16 %v654
        %v681 = vunpack.c.h.bf16 %v655
        %v682 = vunpack.c.l.bf16 %v656
        %v683 = vunpack.c.l.bf16 %v657
        %v684 = vunpack.c.h.bf16 %v656
        %v685 = vunpack.c.h.bf16 %v657
        %v686 = vunpack.c.l.bf16 %v658
        %v687 = vunpack.c.l.bf16 %v659
        %v688 = vunpack.c.h.bf16 %v658
        %v689 = vunpack.c.h.bf16 %v659
        %v690 = vunpack.c.l.bf16 %v660
        %v691 = vunpack.c.l.bf16 %v661
        %v692 = vunpack.c.h.bf16 %v660
        %v693 = vunpack.c.h.bf16 %v661
        %s694 = sld [smem:[#allocation6 + %s38]]
        %s695 = sadd.f32 %s694, 1.0
        %v696 = vstv %s695
        %v697 = vmul.f32 %v696, %v662
        %v698 = vmul.f32 %v696, %v663
        %v699 = vmul.f32 %v696, %v664
        %v700 = vmul.f32 %v696, %v665
        %v701 = vmul.f32 %v696, %v666
        %v702 = vmul.f32 %v696, %v667
        %v703 = vmul.f32 %v696, %v668
        %v704 = vmul.f32 %v696, %v669
        %v705 = vmul.f32 %v696, %v670
        %v706 = vmul.f32 %v696, %v671
        %v707 = vmul.f32 %v696, %v672
        %v708 = vmul.f32 %v696, %v673
        %v709 = vmul.f32 %v696, %v674
        %v710 = vmul.f32 %v696, %v675
        %v711 = vmul.f32 %v696, %v676
        %v712 = vmul.f32 %v696, %v677
        %v713 = vmul.f32 %v696, %v678
        %v714 = vmul.f32 %v696, %v679
        %v715 = vmul.f32 %v696, %v680
        %v716 = vmul.f32 %v696, %v681
        %v717 = vmul.f32 %v696, %v682
        %v718 = vmul.f32 %v696, %v683
        %v719 = vmul.f32 %v696, %v684
        %v720 = vmul.f32 %v696, %v685
        %v721 = vmul.f32 %v696, %v686
        %v722 = vmul.f32 %v696, %v687
        %v723 = vmul.f32 %v696, %v688
        %v724 = vmul.f32 %v696, %v689
        %v725 = vmul.f32 %v696, %v690
        %v726 = vmul.f32 %v696, %v691
        %v727 = vmul.f32 %v696, %v692
        %v728 = vmul.f32 %v696, %v693
        %729 = vmatprep.subr.bf16.mxu0 %v627
        %730 = vmatpush1.bf16.msra.mxu0 %v626
        %731 = vmatprep.subr.bf16.mxu0 %v629
        %732 = vmatpush1.bf16.msra.mxu0 %v628
        %733 = vmatprep.subr.bf16.mxu0 %v631
        %734 = vmatpush1.bf16.msra.mxu0 %v630
        %735 = vmatprep.subr.bf16.mxu0 %v633
        %736 = vmatpush1.bf16.msra.mxu0 %v632
        %737 = vmatprep.subr.bf16.mxu0 %v635
        %738 = vmatpush1.bf16.msra.mxu0 %v634
        %739 = vmatprep.subr.bf16.mxu0 %v637
        %740 = vmatpush1.bf16.msra.mxu0 %v636
        %741 = vmatprep.subr.bf16.mxu0 %v639
        %742 = vmatpush1.bf16.msra.mxu0 %v638
        %743 = vmatprep.subr.bf16.mxu0 %v641
        %744 = vmatpush1.bf16.msra.mxu0 %v640
        %745 = vmatprep.subr.bf16.mxu0 0
        %746 = vmatpush1.bf16.msra.mxu0 0
        %747 = vmatprep.subr.bf16.mxu0 0
        %748 = vmatpush1.bf16.msra.mxu0 0
        %749 = vmatprep.subr.bf16.mxu0 0
        %750 = vmatpush1.bf16.msra.mxu0 0
        %751 = vmatprep.subr.bf16.mxu0 0
        %752 = vmatpush1.bf16.msra.mxu0 0
        %753 = vmatprep.subr.bf16.mxu0 0
        %754 = vmatpush1.bf16.msra.mxu0 0
        %755 = vmatprep.subr.bf16.mxu0 0
        %756 = vmatpush1.bf16.msra.mxu0 0
        %757 = vmatprep.subr.bf16.mxu0 0
        %758 = vmatpush1.bf16.msra.mxu0 0
        %759 = vmatprep.subr.bf16.mxu0 0
        %760 = vmatpush1.bf16.msra.mxu0 0
        %761 = vmatprep.mubr.bf16.mxu0 0
        %762 = vmatmul.mubr.bf16.gmra.mrb[0].mxu0 %v615
        %v763 = vpop.f32.mrb[0].mxu0
        %v764 = vadd.f32 %v697, %v763
        %v765 = vpop.f32.mrb[0].mxu0
        %v766 = vadd.f32 %v698, %v765
        %v767 = vpop.f32.mrb[0].mxu0
        %v768 = vadd.f32 %v699, %v767
        %v769 = vpop.f32.mrb[0].mxu0
        %v770 = vadd.f32 %v700, %v769
        %771 = vmatprep.mubr.bf16.mxu0 0
        %772 = vmatmul.mubr.bf16.gmra.mrb[0].mxu0 %v616
        %v773 = vpop.f32.mrb[0].mxu0
        %v774 = vadd.f32 %v701, %v773
        %v775 = vpop.f32.mrb[0].mxu0
        %v776 = vadd.f32 %v702, %v775
        %v777 = vpop.f32.mrb[0].mxu0
        %v778 = vadd.f32 %v703, %v777
        %v779 = vpop.f32.mrb[0].mxu0
        %v780 = vadd.f32 %v704, %v779
        %781 = vmatprep.mubr.bf16.mxu0 0
        %782 = vmatmul.mubr.bf16.gmra.mrb[0].mxu0 %v617
        %v783 = vpop.f32.mrb[0].mxu0
        %v784 = vadd.f32 %v705, %v783
        %v785 = vpop.f32.mrb[0].mxu0
        %v786 = vadd.f32 %v706, %v785
        %v787 = vpop.f32.mrb[0].mxu0
        %v788 = vadd.f32 %v707, %v787
        %v789 = vpop.f32.mrb[0].mxu0
        %v790 = vadd.f32 %v708, %v789
        %791 = vmatprep.mubr.bf16.mxu0 0
        %792 = vmatmul.mubr.bf16.gmra.mrb[0].mxu0 %v618
        %v793 = vpop.f32.mrb[0].mxu0
        %v794 = vadd.f32 %v709, %v793
        %v795 = vpop.f32.mrb[0].mxu0
        %v796 = vadd.f32 %v710, %v795
        %v797 = vpop.f32.mrb[0].mxu0
        %v798 = vadd.f32 %v711, %v797
        %v799 = vpop.f32.mrb[0].mxu0
        %v800 = vadd.f32 %v712, %v799
        %801 = vmatprep.mubr.bf16.mxu0 0
        %802 = vmatmul.mubr.bf16.gmra.mrb[0].mxu0 %v619
        %v803 = vpop.f32.mrb[0].mxu0
        %v804 = vadd.f32 %v713, %v803
        %v805 = vpop.f32.mrb[0].mxu0
        %v806 = vadd.f32 %v714, %v805
        %v807 = vpop.f32.mrb[0].mxu0
        %v808 = vadd.f32 %v715, %v807
        %v809 = vpop.f32.mrb[0].mxu0
        %v810 = vadd.f32 %v716, %v809
        %811 = vmatprep.mubr.bf16.mxu0 0
        %812 = vmatmul.mubr.bf16.gmra.mrb[0].mxu0 %v620
        %v813 = vpop.f32.mrb[0].mxu0
        %v814 = vadd.f32 %v717, %v813
        %v815 = vpop.f32.mrb[0].mxu0
        %v816 = vadd.f32 %v718, %v815
        %v817 = vpop.f32.mrb[0].mxu0
        %v818 = vadd.f32 %v719, %v817
        %v819 = vpop.f32.mrb[0].mxu0
        %v820 = vadd.f32 %v720, %v819
        %821 = vmatprep.mubr.bf16.mxu0 0
        %822 = vmatmul.mubr.bf16.gmra.mrb[0].mxu0 %v621
        %v823 = vpop.f32.mrb[0].mxu0
        %v824 = vadd.f32 %v721, %v823
        %v825 = vpop.f32.mrb[0].mxu0
        %v826 = vadd.f32 %v722, %v825
        %v827 = vpop.f32.mrb[0].mxu0
        %v828 = vadd.f32 %v723, %v827
        %v829 = vpop.f32.mrb[0].mxu0
        %v830 = vadd.f32 %v724, %v829
        %831 = vmatprep.mubr.bf16.mxu0 0
        %832 = vmatmul.mubr.bf16.gmra.mrb[0].mxu0 %v622
        %v833 = vpop.f32.mrb[0].mxu0
        %v834 = vadd.f32 %v725, %v833
        %v835 = vpop.f32.mrb[0].mxu0
        %v836 = vadd.f32 %v726, %v835
        %v837 = vpop.f32.mrb[0].mxu0
        %v838 = vadd.f32 %v727, %v837
        %v839 = vpop.f32.mrb[0].mxu0
        %v840 = vadd.f32 %v728, %v839
        %841 = vdwg.mxu0
        %v842 = vld [vmem:[%s452] sm:$0xff]
        %v843 = vld [vmem:[%s452 + $0x8] sm:$0xff]
        %v844 = vld [vmem:[%s452 + $0x10] sm:$0xff]
        %v845 = vld [vmem:[%s452 + $0x18] sm:$0xff]
        %v846 = vld [vmem:[%s452 + $0x20] sm:$0xff]
        %v847 = vld [vmem:[%s452 + $0x28] sm:$0xff]
        %v848 = vld [vmem:[%s452 + $0x30] sm:$0xff]
        %v849 = vld [vmem:[%s452 + $0x38] sm:$0xff]
        %v850 = vld [vmem:[%s452 + $0x40] sm:$0xff]
        %v851 = vld [vmem:[%s452 + $0x48] sm:$0xff]
        %v852 = vld [vmem:[%s452 + $0x50] sm:$0xff]
        %v853 = vld [vmem:[%s452 + $0x58] sm:$0xff]
        %v854 = vld [vmem:[%s452 + $0x60] sm:$0xff]
        %v855 = vld [vmem:[%s452 + $0x68] sm:$0xff]
        %v856 = vld [vmem:[%s452 + $0x70] sm:$0xff]
        %v857 = vld [vmem:[%s452 + $0x78] sm:$0xff]
        %v858 = vld [vmem:[%s452 + $0x80] sm:$0xff]
        %v859 = vld [vmem:[%s452 + $0x88] sm:$0xff]
        %v860 = vld [vmem:[%s452 + $0x90] sm:$0xff]
        %v861 = vld [vmem:[%s452 + $0x98] sm:$0xff]
        %v862 = vld [vmem:[%s452 + $0xa0] sm:$0xff]
        %v863 = vld [vmem:[%s452 + $0xa8] sm:$0xff]
        %v864 = vld [vmem:[%s452 + $0xb0] sm:$0xff]
        %v865 = vld [vmem:[%s452 + $0xb8] sm:$0xff]
        %v866 = vld [vmem:[%s452 + $0xc0] sm:$0xff]
        %v867 = vld [vmem:[%s452 + $0xc8] sm:$0xff]
        %v868 = vld [vmem:[%s452 + $0xd0] sm:$0xff]
        %v869 = vld [vmem:[%s452 + $0xd8] sm:$0xff]
        %v870 = vld [vmem:[%s452 + $0xe0] sm:$0xff]
        %v871 = vld [vmem:[%s452 + $0xe8] sm:$0xff]
        %v872 = vld [vmem:[%s452 + $0xf0] sm:$0xff]
        %v873 = vld [vmem:[%s452 + $0xf8] sm:$0xff]
        %v874 = vld [vmem:[%s452 + $0x100] sm:$0xff]
        %v875 = vld [vmem:[%s452 + $0x108] sm:$0xff]
        %v876 = vld [vmem:[%s452 + $0x110] sm:$0xff]
        %v877 = vld [vmem:[%s452 + $0x118] sm:$0xff]
        %v878 = vld [vmem:[%s452 + $0x120] sm:$0xff]
        %v879 = vld [vmem:[%s452 + $0x128] sm:$0xff]
        %v880 = vld [vmem:[%s452 + $0x130] sm:$0xff]
        %v881 = vld [vmem:[%s452 + $0x138] sm:$0xff]
        %v882 = vld [vmem:[%s452 + $0x140] sm:$0xff]
        %v883 = vld [vmem:[%s452 + $0x148] sm:$0xff]
        %v884 = vld [vmem:[%s452 + $0x150] sm:$0xff]
        %v885 = vld [vmem:[%s452 + $0x158] sm:$0xff]
        %v886 = vld [vmem:[%s452 + $0x160] sm:$0xff]
        %v887 = vld [vmem:[%s452 + $0x168] sm:$0xff]
        %v888 = vld [vmem:[%s452 + $0x170] sm:$0xff]
        %v889 = vld [vmem:[%s452 + $0x178] sm:$0xff]
        %v890 = vld [vmem:[%s452 + $0x180] sm:$0xff]
        %v891 = vld [vmem:[%s452 + $0x188] sm:$0xff]
        %v892 = vld [vmem:[%s452 + $0x190] sm:$0xff]
        %v893 = vld [vmem:[%s452 + $0x198] sm:$0xff]
        %v894 = vld [vmem:[%s452 + $0x1a0] sm:$0xff]
        %v895 = vld [vmem:[%s452 + $0x1a8] sm:$0xff]
        %v896 = vld [vmem:[%s452 + $0x1b0] sm:$0xff]
        %v897 = vld [vmem:[%s452 + $0x1b8] sm:$0xff]
        %v898 = vld [vmem:[%s452 + $0x1c0] sm:$0xff]
        %v899 = vld [vmem:[%s452 + $0x1c8] sm:$0xff]
        %v900 = vld [vmem:[%s452 + $0x1d0] sm:$0xff]
        %v901 = vld [vmem:[%s452 + $0x1d8] sm:$0xff]
        %v902 = vld [vmem:[%s452 + $0x1e0] sm:$0xff]
        %v903 = vld [vmem:[%s452 + $0x1e8] sm:$0xff]
        %v904 = vld [vmem:[%s452 + $0x1f0] sm:$0xff]
        %v905 = vld [vmem:[%s452 + $0x1f8] sm:$0xff]
        %v906 = vld [vmem:[%s520] sm:$0x3]
        %v908 = vlaneseq
        %v909 = vshrl.u32 %v908, 7
        %v910 = vsub.s32 0, %v909
        %v911 = vrot.slane %v906, %v910
        %v912 = vlaneseq
        %v913 = vshrl.u32 %v912, 7
        %v914 = vsub.s32 1, %v913
        %v915 = vrot.slane %v906, %v914
        %918 = vmatprep.subr.mxu0 %v843
        %919 = vmatpush1.msra.mxu0 %v842
        %920 = vmatprep.subr.mxu0 %v845
        %921 = vmatpush1.msra.mxu0 %v844
        %922 = vmatprep.subr.mxu0 %v847
        %923 = vmatpush1.msra.mxu0 %v846
        %924 = vmatprep.subr.mxu0 %v849
        %925 = vmatpush1.msra.mxu0 %v848
        %926 = vmatprep.subr.mxu0 %v851
        %927 = vmatpush1.msra.mxu0 %v850
        %928 = vmatprep.subr.mxu0 %v853
        %929 = vmatpush1.msra.mxu0 %v852
        %930 = vmatprep.subr.mxu0 %v855
        %931 = vmatpush1.msra.mxu0 %v854
        %932 = vmatprep.subr.mxu0 %v857
        %933 = vmatpush1.msra.mxu0 %v856
        %934 = vmatprep.subr.mxu0 %v859
        %935 = vmatpush1.msra.mxu0 %v858
        %936 = vmatprep.subr.mxu0 %v861
        %937 = vmatpush1.msra.mxu0 %v860
        %938 = vmatprep.subr.mxu0 %v863
        %939 = vmatpush1.msra.mxu0 %v862
        %940 = vmatprep.subr.mxu0 %v865
        %941 = vmatpush1.msra.mxu0 %v864
        %942 = vmatprep.subr.mxu0 %v867
        %943 = vmatpush1.msra.mxu0 %v866
        %944 = vmatprep.subr.mxu0 %v869
        %945 = vmatpush1.msra.mxu0 %v868
        %946 = vmatprep.subr.mxu0 %v871
        %947 = vmatpush1.msra.mxu0 %v870
        %948 = vmatprep.subr.mxu0 %v873
        %949 = vmatpush1.msra.mxu0 %v872
        %950 = vmatprep.subr.mxu0 %v875
        %951 = vmatpush1.msra.mxu0 %v874
        %952 = vmatprep.subr.mxu0 %v877
        %953 = vmatpush1.msra.mxu0 %v876
        %954 = vmatprep.subr.mxu0 %v879
        %955 = vmatpush1.msra.mxu0 %v878
        %956 = vmatprep.subr.mxu0 %v881
        %957 = vmatpush1.msra.mxu0 %v880
        %958 = vmatprep.subr.mxu0 %v883
        %959 = vmatpush1.msra.mxu0 %v882
        %960 = vmatprep.subr.mxu0 %v885
        %961 = vmatpush1.msra.mxu0 %v884
        %962 = vmatprep.subr.mxu0 %v887
        %963 = vmatpush1.msra.mxu0 %v886
        %964 = vmatprep.subr.mxu0 %v889
        %965 = vmatpush1.msra.mxu0 %v888
        %966 = vmatprep.subr.mxu0 %v891
        %967 = vmatpush1.msra.mxu0 %v890
        %968 = vmatprep.subr.mxu0 %v893
        %969 = vmatpush1.msra.mxu0 %v892
        %970 = vmatprep.subr.mxu0 %v895
        %971 = vmatpush1.msra.mxu0 %v894
        %972 = vmatprep.subr.mxu0 %v897
        %973 = vmatpush1.msra.mxu0 %v896
        %974 = vmatprep.subr.mxu0 %v899
        %975 = vmatpush1.msra.mxu0 %v898
        %976 = vmatprep.subr.mxu0 %v901
        %977 = vmatpush1.msra.mxu0 %v900
        %978 = vmatprep.subr.mxu0 %v903
        %979 = vmatpush1.msra.mxu0 %v902
        %980 = vmatprep.subr.mxu0 %v905
        %981 = vmatpush1.msra.mxu0 %v904
        %982 = vmatprep.mubr.f32.mxu0 %v766
        %983 = vmatmul.mubr.f32.gmra.mrb[0].mxu0 %v764
        %v984 = vpop.f32.mrb[0].mxu0
        %v985 = vadd.f32 %v911, %v984
        %v986 = vpop.f32.mrb[0].mxu0
        %v987 = vadd.f32 %v915, %v986
        %988 = vmatprep.mubr.f32.mxu0 %v770
        %989 = vmatmul.mubr.f32.gmra.mrb[0].mxu0 %v768
        %v990 = vpop.f32.mrb[0].mxu0
        %v991 = vadd.f32 %v911, %v990
        %v992 = vpop.f32.mrb[0].mxu0
        %v993 = vadd.f32 %v915, %v992
        %994 = vmatprep.mubr.f32.mxu0 %v776
        %995 = vmatmul.mubr.f32.gmra.mrb[0].mxu0 %v774
        %v996 = vpop.f32.mrb[0].mxu0
        %v997 = vadd.f32 %v911, %v996
        %v998 = vpop.f32.mrb[0].mxu0
        %v999 = vadd.f32 %v915, %v998
        %1000 = vmatprep.mubr.f32.mxu0 %v780
        %1001 = vmatmul.mubr.f32.gmra.mrb[0].mxu0 %v778
        %v1002 = vpop.f32.mrb[0].mxu0
        %v1003 = vadd.f32 %v911, %v1002
        %v1004 = vpop.f32.mrb[0].mxu0
        %v1005 = vadd.f32 %v915, %v1004
        %1006 = vmatprep.mubr.f32.mxu0 %v786
        %1007 = vmatmul.mubr.f32.gmra.mrb[0].mxu0 %v784
        %v1008 = vpop.f32.mrb[0].mxu0
        %v1009 = vadd.f32 %v911, %v1008
        %v1010 = vpop.f32.mrb[0].mxu0
        %v1011 = vadd.f32 %v915, %v1010
        %1012 = vmatprep.mubr.f32.mxu0 %v790
        %1013 = vmatmul.mubr.f32.gmra.mrb[0].mxu0 %v788
        %v1014 = vpop.f32.mrb[0].mxu0
        %v1015 = vadd.f32 %v911, %v1014
        %v1016 = vpop.f32.mrb[0].mxu0
        %v1017 = vadd.f32 %v915, %v1016
        %1018 = vmatprep.mubr.f32.mxu0 %v796
        %1019 = vmatmul.mubr.f32.gmra.mrb[0].mxu0 %v794
        %v1020 = vpop.f32.mrb[0].mxu0
        %v1021 = vadd.f32 %v911, %v1020
        %v1022 = vpop.f32.mrb[0].mxu0
        %v1023 = vadd.f32 %v915, %v1022
        %1024 = vmatprep.mubr.f32.mxu0 %v800
        %1025 = vmatmul.mubr.f32.gmra.mrb[0].mxu0 %v798
        %v1026 = vpop.f32.mrb[0].mxu0
        %v1027 = vadd.f32 %v911, %v1026
        %v1028 = vpop.f32.mrb[0].mxu0
        %v1029 = vadd.f32 %v915, %v1028
        %1030 = vmatprep.mubr.f32.mxu0 %v806
        %1031 = vmatmul.mubr.f32.gmra.mrb[0].mxu0 %v804
        %v1032 = vpop.f32.mrb[0].mxu0
        %v1033 = vadd.f32 %v911, %v1032
        %v1034 = vpop.f32.mrb[0].mxu0
        %v1035 = vadd.f32 %v915, %v1034
        %1036 = vmatprep.mubr.f32.mxu0 %v810
        %1037 = vmatmul.mubr.f32.gmra.mrb[0].mxu0 %v808
        %v1038 = vpop.f32.mrb[0].mxu0
        %v1039 = vadd.f32 %v911, %v1038
        %v1040 = vpop.f32.mrb[0].mxu0
        %v1041 = vadd.f32 %v915, %v1040
        %1042 = vmatprep.mubr.f32.mxu0 %v816
        %1043 = vmatmul.mubr.f32.gmra.mrb[0].mxu0 %v814
        %v1044 = vpop.f32.mrb[0].mxu0
        %v1045 = vadd.f32 %v911, %v1044
        %v1046 = vpop.f32.mrb[0].mxu0
        %v1047 = vadd.f32 %v915, %v1046
        %1048 = vmatprep.mubr.f32.mxu0 %v820
        %1049 = vmatmul.mubr.f32.gmra.mrb[0].mxu0 %v818
        %v1050 = vpop.f32.mrb[0].mxu0
        %v1051 = vadd.f32 %v911, %v1050
        %v1052 = vpop.f32.mrb[0].mxu0
        %v1053 = vadd.f32 %v915, %v1052
        %1054 = vmatprep.mubr.f32.mxu0 %v826
        %1055 = vmatmul.mubr.f32.gmra.mrb[0].mxu0 %v824
        %v1056 = vpop.f32.mrb[0].mxu0
        %v1057 = vadd.f32 %v911, %v1056
        %v1058 = vpop.f32.mrb[0].mxu0
        %v1059 = vadd.f32 %v915, %v1058
        %1060 = vmatprep.mubr.f32.mxu0 %v830
        %1061 = vmatmul.mubr.f32.gmra.mrb[0].mxu0 %v828
        %v1062 = vpop.f32.mrb[0].mxu0
        %v1063 = vadd.f32 %v911, %v1062
        %v1064 = vpop.f32.mrb[0].mxu0
        %v1065 = vadd.f32 %v915, %v1064
        %1066 = vmatprep.mubr.f32.mxu0 %v836
        %1067 = vmatmul.mubr.f32.gmra.mrb[0].mxu0 %v834
        %v1068 = vpop.f32.mrb[0].mxu0
        %v1069 = vadd.f32 %v911, %v1068
        %v1070 = vpop.f32.mrb[0].mxu0
        %v1071 = vadd.f32 %v915, %v1070
        %1072 = vmatprep.mubr.f32.mxu0 %v840
        %1073 = vmatmul.mubr.f32.gmra.mrb[0].mxu0 %v838
        %v1074 = vpop.f32.mrb[0].mxu0
        %v1075 = vadd.f32 %v911, %v1074
        %v1076 = vpop.f32.mrb[0].mxu0
        %v1077 = vadd.f32 %v915, %v1076
        %1078 = vdwg.mxu0
        %vm1079 = vcmp.gt.f32.partialorder %v985, 0.0
        %vm1080 = vcmp.gt.f32.partialorder %v987, 0.0
        %vm1081 = vcmp.gt.f32.partialorder %v991, 0.0
        %vm1082 = vcmp.gt.f32.partialorder %v993, 0.0
        %vm1083 = vcmp.gt.f32.partialorder %v997, 0.0
        %vm1084 = vcmp.gt.f32.partialorder %v999, 0.0
        %vm1085 = vcmp.gt.f32.partialorder %v1003, 0.0
        %vm1086 = vcmp.gt.f32.partialorder %v1005, 0.0
        %vm1087 = vcmp.gt.f32.partialorder %v1009, 0.0
        %vm1088 = vcmp.gt.f32.partialorder %v1011, 0.0
        %vm1089 = vcmp.gt.f32.partialorder %v1015, 0.0
        %vm1090 = vcmp.gt.f32.partialorder %v1017, 0.0
        %vm1091 = vcmp.gt.f32.partialorder %v1021, 0.0
        %vm1092 = vcmp.gt.f32.partialorder %v1023, 0.0
        %vm1093 = vcmp.gt.f32.partialorder %v1027, 0.0
        %vm1094 = vcmp.gt.f32.partialorder %v1029, 0.0
        %vm1095 = vcmp.gt.f32.partialorder %v1033, 0.0
        %vm1096 = vcmp.gt.f32.partialorder %v1035, 0.0
        %vm1097 = vcmp.gt.f32.partialorder %v1039, 0.0
        %vm1098 = vcmp.gt.f32.partialorder %v1041, 0.0
        %vm1099 = vcmp.gt.f32.partialorder %v1045, 0.0
        %vm1100 = vcmp.gt.f32.partialorder %v1047, 0.0
        %vm1101 = vcmp.gt.f32.partialorder %v1051, 0.0
        %vm1102 = vcmp.gt.f32.partialorder %v1053, 0.0
        %vm1103 = vcmp.gt.f32.partialorder %v1057, 0.0
        %vm1104 = vcmp.gt.f32.partialorder %v1059, 0.0
        %vm1105 = vcmp.gt.f32.partialorder %v1063, 0.0
        %vm1106 = vcmp.gt.f32.partialorder %v1065, 0.0
        %vm1107 = vcmp.gt.f32.partialorder %v1069, 0.0
        %vm1108 = vcmp.gt.f32.partialorder %v1071, 0.0
        %vm1109 = vcmp.gt.f32.partialorder %v1075, 0.0
        %vm1110 = vcmp.gt.f32.partialorder %v1077, 0.0
        %v1111 = vmul.f32 %v985, 0.01
        %v1112 = vmul.f32 %v987, 0.01
        %v1113 = vmul.f32 %v991, 0.01
        %v1114 = vmul.f32 %v993, 0.01
        %v1115 = vmul.f32 %v997, 0.01
        %v1116 = vmul.f32 %v999, 0.01
        %v1117 = vmul.f32 %v1003, 0.01
        %v1118 = vmul.f32 %v1005, 0.01
        %v1119 = vmul.f32 %v1009, 0.01
        %v1120 = vmul.f32 %v1011, 0.01
        %v1121 = vmul.f32 %v1015, 0.01
        %v1122 = vmul.f32 %v1017, 0.01
        %v1123 = vmul.f32 %v1021, 0.01
        %v1124 = vmul.f32 %v1023, 0.01
        %v1125 = vmul.f32 %v1027, 0.01
        %v1126 = vmul.f32 %v1029, 0.01
        %v1127 = vmul.f32 %v1033, 0.01
        %v1128 = vmul.f32 %v1035, 0.01
        %v1129 = vmul.f32 %v1039, 0.01
        %v1130 = vmul.f32 %v1041, 0.01
        %v1131 = vmul.f32 %v1045, 0.01
        %v1132 = vmul.f32 %v1047, 0.01
        %v1133 = vmul.f32 %v1051, 0.01
        %v1134 = vmul.f32 %v1053, 0.01
        %v1135 = vmul.f32 %v1057, 0.01
        %v1136 = vmul.f32 %v1059, 0.01
        %v1137 = vmul.f32 %v1063, 0.01
        %v1138 = vmul.f32 %v1065, 0.01
        %v1139 = vmul.f32 %v1069, 0.01
        %v1140 = vmul.f32 %v1071, 0.01
        %v1141 = vmul.f32 %v1075, 0.01
        %v1142 = vmul.f32 %v1077, 0.01
        %v1143 = vsel %vm1079, %v985, %v1111
        %v1144 = vsel %vm1080, %v987, %v1112
        %v1145 = vsel %vm1081, %v991, %v1113
        %v1146 = vsel %vm1082, %v993, %v1114
        %v1147 = vsel %vm1083, %v997, %v1115
        %v1148 = vsel %vm1084, %v999, %v1116
        %v1149 = vsel %vm1085, %v1003, %v1117
        %v1150 = vsel %vm1086, %v1005, %v1118
        %v1151 = vsel %vm1087, %v1009, %v1119
        %v1152 = vsel %vm1088, %v1011, %v1120
        %v1153 = vsel %vm1089, %v1015, %v1121
        %v1154 = vsel %vm1090, %v1017, %v1122
        %v1155 = vsel %vm1091, %v1021, %v1123
        %v1156 = vsel %vm1092, %v1023, %v1124
        %v1157 = vsel %vm1093, %v1027, %v1125
        %v1158 = vsel %vm1094, %v1029, %v1126
        %v1159 = vsel %vm1095, %v1033, %v1127
        %v1160 = vsel %vm1096, %v1035, %v1128
        %v1161 = vsel %vm1097, %v1039, %v1129
        %v1162 = vsel %vm1098, %v1041, %v1130
        %v1163 = vsel %vm1099, %v1045, %v1131
        %v1164 = vsel %vm1100, %v1047, %v1132
        %v1165 = vsel %vm1101, %v1051, %v1133
        %v1166 = vsel %vm1102, %v1053, %v1134
        %v1167 = vsel %vm1103, %v1057, %v1135
        %v1168 = vsel %vm1104, %v1059, %v1136
        %v1169 = vsel %vm1105, %v1063, %v1137
        %v1170 = vsel %vm1106, %v1065, %v1138
        %v1171 = vsel %vm1107, %v1069, %v1139
        %v1172 = vsel %vm1108, %v1071, %v1140
        %v1173 = vsel %vm1109, %v1075, %v1141
        %v1174 = vsel %vm1110, %v1077, %v1142
        %v1175 = vld [vmem:[%s461] sm:$0xff]
        %v1176 = vld [vmem:[%s461 + $0x8] sm:$0xff]
        %v1177 = vld [vmem:[%s461 + $0x10] sm:$0xff]
        %v1178 = vld [vmem:[%s461 + $0x18] sm:$0xff]
        %v1179 = vld [vmem:[%s461 + $0x20] sm:$0xff]
        %v1180 = vld [vmem:[%s461 + $0x28] sm:$0xff]
        %v1181 = vld [vmem:[%s461 + $0x30] sm:$0xff]
        %v1182 = vld [vmem:[%s461 + $0x38] sm:$0xff]
        %v1183 = vld [vmem:[%s461 + $0x40] sm:$0xff]
        %v1184 = vld [vmem:[%s461 + $0x48] sm:$0xff]
        %v1185 = vld [vmem:[%s461 + $0x50] sm:$0xff]
        %v1186 = vld [vmem:[%s461 + $0x58] sm:$0xff]
        %v1187 = vld [vmem:[%s461 + $0x60] sm:$0xff]
        %v1188 = vld [vmem:[%s461 + $0x68] sm:$0xff]
        %v1189 = vld [vmem:[%s461 + $0x70] sm:$0xff]
        %v1190 = vld [vmem:[%s461 + $0x78] sm:$0xff]
        %v1191 = vld [vmem:[%s461 + $0x80] sm:$0xff]
        %v1192 = vld [vmem:[%s461 + $0x88] sm:$0xff]
        %v1193 = vld [vmem:[%s461 + $0x90] sm:$0xff]
        %v1194 = vld [vmem:[%s461 + $0x98] sm:$0xff]
        %v1195 = vld [vmem:[%s461 + $0xa0] sm:$0xff]
        %v1196 = vld [vmem:[%s461 + $0xa8] sm:$0xff]
        %v1197 = vld [vmem:[%s461 + $0xb0] sm:$0xff]
        %v1198 = vld [vmem:[%s461 + $0xb8] sm:$0xff]
        %v1199 = vld [vmem:[%s461 + $0xc0] sm:$0xff]
        %v1200 = vld [vmem:[%s461 + $0xc8] sm:$0xff]
        %v1201 = vld [vmem:[%s461 + $0xd0] sm:$0xff]
        %v1202 = vld [vmem:[%s461 + $0xd8] sm:$0xff]
        %v1203 = vld [vmem:[%s461 + $0xe0] sm:$0xff]
        %v1204 = vld [vmem:[%s461 + $0xe8] sm:$0xff]
        %v1205 = vld [vmem:[%s461 + $0xf0] sm:$0xff]
        %v1206 = vld [vmem:[%s461 + $0xf8] sm:$0xff]
        %v1207 = vld [vmem:[%s461 + $0x100] sm:$0xff]
        %v1208 = vld [vmem:[%s461 + $0x108] sm:$0xff]
        %v1209 = vld [vmem:[%s461 + $0x110] sm:$0xff]
        %v1210 = vld [vmem:[%s461 + $0x118] sm:$0xff]
        %v1211 = vld [vmem:[%s461 + $0x120] sm:$0xff]
        %v1212 = vld [vmem:[%s461 + $0x128] sm:$0xff]
        %v1213 = vld [vmem:[%s461 + $0x130] sm:$0xff]
        %v1214 = vld [vmem:[%s461 + $0x138] sm:$0xff]
        %v1215 = vld [vmem:[%s461 + $0x140] sm:$0xff]
        %v1216 = vld [vmem:[%s461 + $0x148] sm:$0xff]
        %v1217 = vld [vmem:[%s461 + $0x150] sm:$0xff]
        %v1218 = vld [vmem:[%s461 + $0x158] sm:$0xff]
        %v1219 = vld [vmem:[%s461 + $0x160] sm:$0xff]
        %v1220 = vld [vmem:[%s461 + $0x168] sm:$0xff]
        %v1221 = vld [vmem:[%s461 + $0x170] sm:$0xff]
        %v1222 = vld [vmem:[%s461 + $0x178] sm:$0xff]
        %v1223 = vld [vmem:[%s461 + $0x180] sm:$0xff]
        %v1224 = vld [vmem:[%s461 + $0x188] sm:$0xff]
        %v1225 = vld [vmem:[%s461 + $0x190] sm:$0xff]
        %v1226 = vld [vmem:[%s461 + $0x198] sm:$0xff]
        %v1227 = vld [vmem:[%s461 + $0x1a0] sm:$0xff]
        %v1228 = vld [vmem:[%s461 + $0x1a8] sm:$0xff]
        %v1229 = vld [vmem:[%s461 + $0x1b0] sm:$0xff]
        %v1230 = vld [vmem:[%s461 + $0x1b8] sm:$0xff]
        %v1231 = vld [vmem:[%s461 + $0x1c0] sm:$0xff]
        %v1232 = vld [vmem:[%s461 + $0x1c8] sm:$0xff]
        %v1233 = vld [vmem:[%s461 + $0x1d0] sm:$0xff]
        %v1234 = vld [vmem:[%s461 + $0x1d8] sm:$0xff]
        %v1235 = vld [vmem:[%s461 + $0x1e0] sm:$0xff]
        %v1236 = vld [vmem:[%s461 + $0x1e8] sm:$0xff]
        %v1237 = vld [vmem:[%s461 + $0x1f0] sm:$0xff]
        %v1238 = vld [vmem:[%s461 + $0x1f8] sm:$0xff]
        %v1239 = vld [vmem:[%s524] sm:$0x3]
        %v1241 = vlaneseq
        %v1242 = vshrl.u32 %v1241, 7
        %v1243 = vsub.s32 0, %v1242
        %v1244 = vrot.slane %v1239, %v1243
        %v1245 = vlaneseq
        %v1246 = vshrl.u32 %v1245, 7
        %v1247 = vsub.s32 1, %v1246
        %v1248 = vrot.slane %v1239, %v1247
        %1251 = vmatprep.subr.mxu0 %v1176
        %1252 = vmatpush1.msra.mxu0 %v1175
        %1253 = vmatprep.subr.mxu0 %v1178
        %1254 = vmatpush1.msra.mxu0 %v1177
        %1255 = vmatprep.subr.mxu0 %v1180
        %1256 = vmatpush1.msra.mxu0 %v1179
        %1257 = vmatprep.subr.mxu0 %v1182
        %1258 = vmatpush1.msra.mxu0 %v1181
        %1259 = vmatprep.subr.mxu0 %v1184
        %1260 = vmatpush1.msra.mxu0 %v1183
        %1261 = vmatprep.subr.mxu0 %v1186
        %1262 = vmatpush1.msra.mxu0 %v1185
        %1263 = vmatprep.subr.mxu0 %v1188
        %1264 = vmatpush1.msra.mxu0 %v1187
        %1265 = vmatprep.subr.mxu0 %v1190
        %1266 = vmatpush1.msra.mxu0 %v1189
        %1267 = vmatprep.subr.mxu0 %v1192
        %1268 = vmatpush1.msra.mxu0 %v1191
        %1269 = vmatprep.subr.mxu0 %v1194
        %1270 = vmatpush1.msra.mxu0 %v1193
        %1271 = vmatprep.subr.mxu0 %v1196
        %1272 = vmatpush1.msra.mxu0 %v1195
        %1273 = vmatprep.subr.mxu0 %v1198
        %1274 = vmatpush1.msra.mxu0 %v1197
        %1275 = vmatprep.subr.mxu0 %v1200
        %1276 = vmatpush1.msra.mxu0 %v1199
        %1277 = vmatprep.subr.mxu0 %v1202
        %1278 = vmatpush1.msra.mxu0 %v1201
        %1279 = vmatprep.subr.mxu0 %v1204
        %1280 = vmatpush1.msra.mxu0 %v1203
        %1281 = vmatprep.subr.mxu0 %v1206
        %1282 = vmatpush1.msra.mxu0 %v1205
        %1283 = vmatprep.subr.mxu0 %v1208
        %1284 = vmatpush1.msra.mxu0 %v1207
        %1285 = vmatprep.subr.mxu0 %v1210
        %1286 = vmatpush1.msra.mxu0 %v1209
        %1287 = vmatprep.subr.mxu0 %v1212
        %1288 = vmatpush1.msra.mxu0 %v1211
        %1289 = vmatprep.subr.mxu0 %v1214
        %1290 = vmatpush1.msra.mxu0 %v1213
        %1291 = vmatprep.subr.mxu0 %v1216
        %1292 = vmatpush1.msra.mxu0 %v1215
        %1293 = vmatprep.subr.mxu0 %v1218
        %1294 = vmatpush1.msra.mxu0 %v1217
        %1295 = vmatprep.subr.mxu0 %v1220
        %1296 = vmatpush1.msra.mxu0 %v1219
        %1297 = vmatprep.subr.mxu0 %v1222
        %1298 = vmatpush1.msra.mxu0 %v1221
        %1299 = vmatprep.subr.mxu0 %v1224
        %1300 = vmatpush1.msra.mxu0 %v1223
        %1301 = vmatprep.subr.mxu0 %v1226
        %1302 = vmatpush1.msra.mxu0 %v1225
        %1303 = vmatprep.subr.mxu0 %v1228
        %1304 = vmatpush1.msra.mxu0 %v1227
        %1305 = vmatprep.subr.mxu0 %v1230
        %1306 = vmatpush1.msra.mxu0 %v1229
        %1307 = vmatprep.subr.mxu0 %v1232
        %1308 = vmatpush1.msra.mxu0 %v1231
        %1309 = vmatprep.subr.mxu0 %v1234
        %1310 = vmatpush1.msra.mxu0 %v1233
        %1311 = vmatprep.subr.mxu0 %v1236
        %1312 = vmatpush1.msra.mxu0 %v1235
        %1313 = vmatprep.subr.mxu0 %v1238
        %1314 = vmatpush1.msra.mxu0 %v1237
        %1315 = vmatprep.mubr.f32.mxu0 %v1144
        %1316 = vmatmul.mubr.f32.gmra.mrb[0].mxu0 %v1143
        %v1317 = vpop.f32.mrb[0].mxu0
        %v1318 = vadd.f32 %v1244, %v1317
        %v1319 = vpop.f32.mrb[0].mxu0
        %v1320 = vadd.f32 %v1248, %v1319
        %1321 = vmatprep.mubr.f32.mxu0 %v1146
        %1322 = vmatmul.mubr.f32.gmra.mrb[0].mxu0 %v1145
        %v1323 = vpop.f32.mrb[0].mxu0
        %v1324 = vadd.f32 %v1244, %v1323
        %v1325 = vpop.f32.mrb[0].mxu0
        %v1326 = vadd.f32 %v1248, %v1325
        %1327 = vmatprep.mubr.f32.mxu0 %v1148
        %1328 = vmatmul.mubr.f32.gmra.mrb[0].mxu0 %v1147
        %v1329 = vpop.f32.mrb[0].mxu0
        %v1330 = vadd.f32 %v1244, %v1329
        %v1331 = vpop.f32.mrb[0].mxu0
        %v1332 = vadd.f32 %v1248, %v1331
        %1333 = vmatprep.mubr.f32.mxu0 %v1150
        %1334 = vmatmul.mubr.f32.gmra.mrb[0].mxu0 %v1149
        %v1335 = vpop.f32.mrb[0].mxu0
        %v1336 = vadd.f32 %v1244, %v1335
        %v1337 = vpop.f32.mrb[0].mxu0
        %v1338 = vadd.f32 %v1248, %v1337
        %1339 = vmatprep.mubr.f32.mxu0 %v1152
        %1340 = vmatmul.mubr.f32.gmra.mrb[0].mxu0 %v1151
        %v1341 = vpop.f32.mrb[0].mxu0
        %v1342 = vadd.f32 %v1244, %v1341
        %v1343 = vpop.f32.mrb[0].mxu0
        %v1344 = vadd.f32 %v1248, %v1343
        %1345 = vmatprep.mubr.f32.mxu0 %v1154
        %1346 = vmatmul.mubr.f32.gmra.mrb[0].mxu0 %v1153
        %v1347 = vpop.f32.mrb[0].mxu0
        %v1348 = vadd.f32 %v1244, %v1347
        %v1349 = vpop.f32.mrb[0].mxu0
        %v1350 = vadd.f32 %v1248, %v1349
        %1351 = vmatprep.mubr.f32.mxu0 %v1156
        %1352 = vmatmul.mubr.f32.gmra.mrb[0].mxu0 %v1155
        %v1353 = vpop.f32.mrb[0].mxu0
        %v1354 = vadd.f32 %v1244, %v1353
        %v1355 = vpop.f32.mrb[0].mxu0
        %v1356 = vadd.f32 %v1248, %v1355
        %1357 = vmatprep.mubr.f32.mxu0 %v1158
        %1358 = vmatmul.mubr.f32.gmra.mrb[0].mxu0 %v1157
        %v1359 = vpop.f32.mrb[0].mxu0
        %v1360 = vadd.f32 %v1244, %v1359
        %v1361 = vpop.f32.mrb[0].mxu0
        %v1362 = vadd.f32 %v1248, %v1361
        %1363 = vmatprep.mubr.f32.mxu0 %v1160
        %1364 = vmatmul.mubr.f32.gmra.mrb[0].mxu0 %v1159
        %v1365 = vpop.f32.mrb[0].mxu0
        %v1366 = vadd.f32 %v1244, %v1365
        %v1367 = vpop.f32.mrb[0].mxu0
        %v1368 = vadd.f32 %v1248, %v1367
        %1369 = vmatprep.mubr.f32.mxu0 %v1162
        %1370 = vmatmul.mubr.f32.gmra.mrb[0].mxu0 %v1161
        %v1371 = vpop.f32.mrb[0].mxu0
        %v1372 = vadd.f32 %v1244, %v1371
        %v1373 = vpop.f32.mrb[0].mxu0
        %v1374 = vadd.f32 %v1248, %v1373
        %1375 = vmatprep.mubr.f32.mxu0 %v1164
        %1376 = vmatmul.mubr.f32.gmra.mrb[0].mxu0 %v1163
        %v1377 = vpop.f32.mrb[0].mxu0
        %v1378 = vadd.f32 %v1244, %v1377
        %v1379 = vpop.f32.mrb[0].mxu0
        %v1380 = vadd.f32 %v1248, %v1379
        %1381 = vmatprep.mubr.f32.mxu0 %v1166
        %1382 = vmatmul.mubr.f32.gmra.mrb[0].mxu0 %v1165
        %v1383 = vpop.f32.mrb[0].mxu0
        %v1384 = vadd.f32 %v1244, %v1383
        %v1385 = vpop.f32.mrb[0].mxu0
        %v1386 = vadd.f32 %v1248, %v1385
        %1387 = vmatprep.mubr.f32.mxu0 %v1168
        %1388 = vmatmul.mubr.f32.gmra.mrb[0].mxu0 %v1167
        %v1389 = vpop.f32.mrb[0].mxu0
        %v1390 = vadd.f32 %v1244, %v1389
        %v1391 = vpop.f32.mrb[0].mxu0
        %v1392 = vadd.f32 %v1248, %v1391
        %1393 = vmatprep.mubr.f32.mxu0 %v1170
        %1394 = vmatmul.mubr.f32.gmra.mrb[0].mxu0 %v1169
        %v1395 = vpop.f32.mrb[0].mxu0
        %v1396 = vadd.f32 %v1244, %v1395
        %v1397 = vpop.f32.mrb[0].mxu0
        %v1398 = vadd.f32 %v1248, %v1397
        %1399 = vmatprep.mubr.f32.mxu0 %v1172
        %1400 = vmatmul.mubr.f32.gmra.mrb[0].mxu0 %v1171
        %v1401 = vpop.f32.mrb[0].mxu0
        %v1402 = vadd.f32 %v1244, %v1401
        %v1403 = vpop.f32.mrb[0].mxu0
        %v1404 = vadd.f32 %v1248, %v1403
        %1405 = vmatprep.mubr.f32.mxu0 %v1174
        %1406 = vmatmul.mubr.f32.gmra.mrb[0].mxu0 %v1173
        %v1407 = vpop.f32.mrb[0].mxu0
        %v1408 = vadd.f32 %v1244, %v1407
        %v1409 = vpop.f32.mrb[0].mxu0
        %v1410 = vadd.f32 %v1248, %v1409
        %1411 = vdwg.mxu0
        %vm1412 = vcmp.gt.f32.partialorder %v1318, 0.0
        %vm1413 = vcmp.gt.f32.partialorder %v1320, 0.0
        %vm1414 = vcmp.gt.f32.partialorder %v1324, 0.0
        %vm1415 = vcmp.gt.f32.partialorder %v1326, 0.0
        %vm1416 = vcmp.gt.f32.partialorder %v1330, 0.0
        %vm1417 = vcmp.gt.f32.partialorder %v1332, 0.0
        %vm1418 = vcmp.gt.f32.partialorder %v1336, 0.0
        %vm1419 = vcmp.gt.f32.partialorder %v1338, 0.0
        %vm1420 = vcmp.gt.f32.partialorder %v1342, 0.0
        %vm1421 = vcmp.gt.f32.partialorder %v1344, 0.0
        %vm1422 = vcmp.gt.f32.partialorder %v1348, 0.0
        %vm1423 = vcmp.gt.f32.partialorder %v1350, 0.0
        %vm1424 = vcmp.gt.f32.partialorder %v1354, 0.0
        %vm1425 = vcmp.gt.f32.partialorder %v1356, 0.0
        %vm1426 = vcmp.gt.f32.partialorder %v1360, 0.0
        %vm1427 = vcmp.gt.f32.partialorder %v1362, 0.0
        %vm1428 = vcmp.gt.f32.partialorder %v1366, 0.0
        %vm1429 = vcmp.gt.f32.partialorder %v1368, 0.0
        %vm1430 = vcmp.gt.f32.partialorder %v1372, 0.0
        %vm1431 = vcmp.gt.f32.partialorder %v1374, 0.0
        %vm1432 = vcmp.gt.f32.partialorder %v1378, 0.0
        %vm1433 = vcmp.gt.f32.partialorder %v1380, 0.0
        %vm1434 = vcmp.gt.f32.partialorder %v1384, 0.0
        %vm1435 = vcmp.gt.f32.partialorder %v1386, 0.0
        %vm1436 = vcmp.gt.f32.partialorder %v1390, 0.0
        %vm1437 = vcmp.gt.f32.partialorder %v1392, 0.0
        %vm1438 = vcmp.gt.f32.partialorder %v1396, 0.0
        %vm1439 = vcmp.gt.f32.partialorder %v1398, 0.0
        %vm1440 = vcmp.gt.f32.partialorder %v1402, 0.0
        %vm1441 = vcmp.gt.f32.partialorder %v1404, 0.0
        %vm1442 = vcmp.gt.f32.partialorder %v1408, 0.0
        %vm1443 = vcmp.gt.f32.partialorder %v1410, 0.0
        %v1444 = vmul.f32 %v1318, 0.01
        %v1445 = vmul.f32 %v1320, 0.01
        %v1446 = vmul.f32 %v1324, 0.01
        %v1447 = vmul.f32 %v1326, 0.01
        %v1448 = vmul.f32 %v1330, 0.01
        %v1449 = vmul.f32 %v1332, 0.01
        %v1450 = vmul.f32 %v1336, 0.01
        %v1451 = vmul.f32 %v1338, 0.01
        %v1452 = vmul.f32 %v1342, 0.01
        %v1453 = vmul.f32 %v1344, 0.01
        %v1454 = vmul.f32 %v1348, 0.01
        %v1455 = vmul.f32 %v1350, 0.01
        %v1456 = vmul.f32 %v1354, 0.01
        %v1457 = vmul.f32 %v1356, 0.01
        %v1458 = vmul.f32 %v1360, 0.01
        %v1459 = vmul.f32 %v1362, 0.01
        %v1460 = vmul.f32 %v1366, 0.01
        %v1461 = vmul.f32 %v1368, 0.01
        %v1462 = vmul.f32 %v1372, 0.01
        %v1463 = vmul.f32 %v1374, 0.01
        %v1464 = vmul.f32 %v1378, 0.01
        %v1465 = vmul.f32 %v1380, 0.01
        %v1466 = vmul.f32 %v1384, 0.01
        %v1467 = vmul.f32 %v1386, 0.01
        %v1468 = vmul.f32 %v1390, 0.01
        %v1469 = vmul.f32 %v1392, 0.01
        %v1470 = vmul.f32 %v1396, 0.01
        %v1471 = vmul.f32 %v1398, 0.01
        %v1472 = vmul.f32 %v1402, 0.01
        %v1473 = vmul.f32 %v1404, 0.01
        %v1474 = vmul.f32 %v1408, 0.01
        %v1475 = vmul.f32 %v1410, 0.01
        %v1476 = vsel %vm1412, %v1318, %v1444
        %v1477 = vsel %vm1413, %v1320, %v1445
        %v1478 = vsel %vm1414, %v1324, %v1446
        %v1479 = vsel %vm1415, %v1326, %v1447
        %v1480 = vsel %vm1416, %v1330, %v1448
        %v1481 = vsel %vm1417, %v1332, %v1449
        %v1482 = vsel %vm1418, %v1336, %v1450
        %v1483 = vsel %vm1419, %v1338, %v1451
        %v1484 = vsel %vm1420, %v1342, %v1452
        %v1485 = vsel %vm1421, %v1344, %v1453
        %v1486 = vsel %vm1422, %v1348, %v1454
        %v1487 = vsel %vm1423, %v1350, %v1455
        %v1488 = vsel %vm1424, %v1354, %v1456
        %v1489 = vsel %vm1425, %v1356, %v1457
        %v1490 = vsel %vm1426, %v1360, %v1458
        %v1491 = vsel %vm1427, %v1362, %v1459
        %v1492 = vsel %vm1428, %v1366, %v1460
        %v1493 = vsel %vm1429, %v1368, %v1461
        %v1494 = vsel %vm1430, %v1372, %v1462
        %v1495 = vsel %vm1431, %v1374, %v1463
        %v1496 = vsel %vm1432, %v1378, %v1464
        %v1497 = vsel %vm1433, %v1380, %v1465
        %v1498 = vsel %vm1434, %v1384, %v1466
        %v1499 = vsel %vm1435, %v1386, %v1467
        %v1500 = vsel %vm1436, %v1390, %v1468
        %v1501 = vsel %vm1437, %v1392, %v1469
        %v1502 = vsel %vm1438, %v1396, %v1470
        %v1503 = vsel %vm1439, %v1398, %v1471
        %v1504 = vsel %vm1440, %v1402, %v1472
        %v1505 = vsel %vm1441, %v1404, %v1473
        %v1506 = vsel %vm1442, %v1408, %v1474
        %v1507 = vsel %vm1443, %v1410, %v1475
        %p1508 = scmp.lt.s32.totalorder %s38, 1
        // Predicated region
        $region93: #{tpu_custom_call.1} parent=63 // pred_check
          %p1509 = pneg %p1508
        $region94: #{tpu_custom_call.1} parent=63 // pred_check_branch
          %1511 = sbr.rel (%p1509) target = $region96
        $region95: #{tpu_custom_call.1} parent=63 // pred_region
          %v1512 = vpack.c.bf16 %v1478, %v1476
          %v1513 = vpack.c.bf16 %v1479, %v1477
          %v1514 = vpack.c.bf16 %v1482, %v1480
          %v1515 = vpack.c.bf16 %v1483, %v1481
          %v1516 = vpack.c.bf16 %v1486, %v1484
          %v1517 = vpack.c.bf16 %v1487, %v1485
          %v1518 = vpack.c.bf16 %v1490, %v1488
          %v1519 = vpack.c.bf16 %v1491, %v1489
          %v1520 = vpack.c.bf16 %v1494, %v1492
          %v1521 = vpack.c.bf16 %v1495, %v1493
          %v1522 = vpack.c.bf16 %v1498, %v1496
          %v1523 = vpack.c.bf16 %v1499, %v1497
          %v1524 = vpack.c.bf16 %v1502, %v1500
          %v1525 = vpack.c.bf16 %v1503, %v1501
          %v1526 = vpack.c.bf16 %v1506, %v1504
          %v1527 = vpack.c.bf16 %v1507, %v1505
          %s1528 = smul.u32 %s610, 16
          %s1529 = sadd.s32 %s642, %s1528
          %s1530 = smul.addr %s1529, 8
          %s1531 = scalar_lea.vmem [#allocation2], %s1530
          %1532 = vst [vmem:[%s1531] sm:$0xff] %v1512
          %1533 = vst [vmem:[%s1531 + $0x8] sm:$0xff] %v1513
          %1534 = vst [vmem:[%s1531 + $0x10] sm:$0xff] %v1514
          %1535 = vst [vmem:[%s1531 + $0x18] sm:$0xff] %v1515
          %1536 = vst [vmem:[%s1531 + $0x20] sm:$0xff] %v1516
          %1537 = vst [vmem:[%s1531 + $0x28] sm:$0xff] %v1517
          %1538 = vst [vmem:[%s1531 + $0x30] sm:$0xff] %v1518
          %1539 = vst [vmem:[%s1531 + $0x38] sm:$0xff] %v1519
          %1540 = vst [vmem:[%s1531 + $0x40] sm:$0xff] %v1520
          %1541 = vst [vmem:[%s1531 + $0x48] sm:$0xff] %v1521
          %1542 = vst [vmem:[%s1531 + $0x50] sm:$0xff] %v1522
          %1543 = vst [vmem:[%s1531 + $0x58] sm:$0xff] %v1523
          %1544 = vst [vmem:[%s1531 + $0x60] sm:$0xff] %v1524
          %1545 = vst [vmem:[%s1531 + $0x68] sm:$0xff] %v1525
          %1546 = vst [vmem:[%s1531 + $0x70] sm:$0xff] %v1526
          %1547 = vst [vmem:[%s1531 + $0x78] sm:$0xff] %v1527
        $region96: #{tpu_custom_call.1} parent=63 // pred_fallthru
          _
        %p1548 = scmp.eq.s32.totalorder %s38, 1
        // Predicated region
        $region97: #{tpu_custom_call.1} parent=63 // pred_check
          %p1549 = pneg %p1548
        $region98: #{tpu_custom_call.1} parent=63 // pred_check_branch
          %1551 = sbr.rel (%p1549) target = $region100
        $region99: #{tpu_custom_call.1} parent=63 // pred_region
          %v1552 = vld [vmem:[#allocation12] sm:$0xff]
          %v1553 = vld [vmem:[#allocation12 + $0x8] sm:$0xff]
          %v1554 = vld [vmem:[#allocation12 + $0x10] sm:$0xff]
          %v1555 = vld [vmem:[#allocation12 + $0x18] sm:$0xff]
          %v1556 = vld [vmem:[#allocation12 + $0x20] sm:$0xff]
          %v1557 = vld [vmem:[#allocation12 + $0x28] sm:$0xff]
          %v1558 = vld [vmem:[#allocation12 + $0x30] sm:$0xff]
          %v1559 = vld [vmem:[#allocation12 + $0x38] sm:$0xff]
          %v1560 = vld [vmem:[#allocation12 + $0x40] sm:$0xff]
          %v1561 = vld [vmem:[#allocation12 + $0x48] sm:$0xff]
          %v1562 = vld [vmem:[#allocation12 + $0x50] sm:$0xff]
          %v1563 = vld [vmem:[#allocation12 + $0x58] sm:$0xff]
          %v1564 = vld [vmem:[#allocation12 + $0x60] sm:$0xff]
          %v1565 = vld [vmem:[#allocation12 + $0x68] sm:$0xff]
          %v1566 = vld [vmem:[#allocation12 + $0x70] sm:$0xff]
          %v1567 = vld [vmem:[#allocation12 + $0x78] sm:$0xff]
          %v1568 = vld [vmem:[#allocation12 + $0x80] sm:$0xff]
          %v1569 = vld [vmem:[#allocation12 + $0x88] sm:$0xff]
          %v1570 = vld [vmem:[#allocation12 + $0x90] sm:$0xff]
          %v1571 = vld [vmem:[#allocation12 + $0x98] sm:$0xff]
          %v1572 = vld [vmem:[#allocation12 + $0xa0] sm:$0xff]
          %v1573 = vld [vmem:[#allocation12 + $0xa8] sm:$0xff]
          %v1574 = vld [vmem:[#allocation12 + $0xb0] sm:$0xff]
          %v1575 = vld [vmem:[#allocation12 + $0xb8] sm:$0xff]
          %v1576 = vld [vmem:[#allocation12 + $0xc0] sm:$0xff]
          %v1577 = vld [vmem:[#allocation12 + $0xc8] sm:$0xff]
          %v1578 = vld [vmem:[#allocation12 + $0xd0] sm:$0xff]
          %v1579 = vld [vmem:[#allocation12 + $0xd8] sm:$0xff]
          %v1580 = vld [vmem:[#allocation12 + $0xe0] sm:$0xff]
          %v1581 = vld [vmem:[#allocation12 + $0xe8] sm:$0xff]
          %v1582 = vld [vmem:[#allocation12 + $0xf0] sm:$0xff]
          %v1583 = vld [vmem:[#allocation12 + $0xf8] sm:$0xff]
          %v1584 = vld [vmem:[#allocation12 + $0x100] sm:$0xff]
          %v1585 = vld [vmem:[#allocation12 + $0x108] sm:$0xff]
          %v1586 = vld [vmem:[#allocation12 + $0x110] sm:$0xff]
          %v1587 = vld [vmem:[#allocation12 + $0x118] sm:$0xff]
          %v1588 = vld [vmem:[#allocation12 + $0x120] sm:$0xff]
          %v1589 = vld [vmem:[#allocation12 + $0x128] sm:$0xff]
          %v1590 = vld [vmem:[#allocation12 + $0x130] sm:$0xff]
          %v1591 = vld [vmem:[#allocation12 + $0x138] sm:$0xff]
          %v1592 = vld [vmem:[#allocation12 + $0x140] sm:$0xff]
          %v1593 = vld [vmem:[#allocation12 + $0x148] sm:$0xff]
          %v1594 = vld [vmem:[#allocation12 + $0x150] sm:$0xff]
          %v1595 = vld [vmem:[#allocation12 + $0x158] sm:$0xff]
          %v1596 = vld [vmem:[#allocation12 + $0x160] sm:$0xff]
          %v1597 = vld [vmem:[#allocation12 + $0x168] sm:$0xff]
          %v1598 = vld [vmem:[#allocation12 + $0x170] sm:$0xff]
          %v1599 = vld [vmem:[#allocation12 + $0x178] sm:$0xff]
          %v1600 = vld [vmem:[#allocation12 + $0x180] sm:$0xff]
          %v1601 = vld [vmem:[#allocation12 + $0x188] sm:$0xff]
          %v1602 = vld [vmem:[#allocation12 + $0x190] sm:$0xff]
          %v1603 = vld [vmem:[#allocation12 + $0x198] sm:$0xff]
          %v1604 = vld [vmem:[#allocation12 + $0x1a0] sm:$0xff]
          %v1605 = vld [vmem:[#allocation12 + $0x1a8] sm:$0xff]
          %v1606 = vld [vmem:[#allocation12 + $0x1b0] sm:$0xff]
          %v1607 = vld [vmem:[#allocation12 + $0x1b8] sm:$0xff]
          %v1608 = vld [vmem:[#allocation12 + $0x1c0] sm:$0xff]
          %v1609 = vld [vmem:[#allocation12 + $0x1c8] sm:$0xff]
          %v1610 = vld [vmem:[#allocation12 + $0x1d0] sm:$0xff]
          %v1611 = vld [vmem:[#allocation12 + $0x1d8] sm:$0xff]
          %v1612 = vld [vmem:[#allocation12 + $0x1e0] sm:$0xff]
          %v1613 = vld [vmem:[#allocation12 + $0x1e8] sm:$0xff]
          %v1614 = vld [vmem:[#allocation12 + $0x1f0] sm:$0xff]
          %v1615 = vld [vmem:[#allocation12 + $0x1f8] sm:$0xff]
          %v1616 = vld [vmem:[%s8] sm:$0x3]
          %v1618 = vlaneseq
          %v1619 = vshrl.u32 %v1618, 7
          %v1620 = vsub.s32 0, %v1619
          %v1621 = vrot.slane %v1616, %v1620
          %v1622 = vlaneseq
          %v1623 = vshrl.u32 %v1622, 7
          %v1624 = vsub.s32 1, %v1623
          %v1625 = vrot.slane %v1616, %v1624
          %1628 = vmatprep.subr.mxu0 %v1553
          %1629 = vmatpush1.msra.mxu0 %v1552
          %1630 = vmatprep.subr.mxu0 %v1555
          %1631 = vmatpush1.msra.mxu0 %v1554
          %1632 = vmatprep.subr.mxu0 %v1557
          %1633 = vmatpush1.msra.mxu0 %v1556
          %1634 = vmatprep.subr.mxu0 %v1559
          %1635 = vmatpush1.msra.mxu0 %v1558
          %1636 = vmatprep.subr.mxu0 %v1561
          %1637 = vmatpush1.msra.mxu0 %v1560
          %1638 = vmatprep.subr.mxu0 %v1563
          %1639 = vmatpush1.msra.mxu0 %v1562
          %1640 = vmatprep.subr.mxu0 %v1565
          %1641 = vmatpush1.msra.mxu0 %v1564
          %1642 = vmatprep.subr.mxu0 %v1567
          %1643 = vmatpush1.msra.mxu0 %v1566
          %1644 = vmatprep.subr.mxu0 %v1569
          %1645 = vmatpush1.msra.mxu0 %v1568
          %1646 = vmatprep.subr.mxu0 %v1571
          %1647 = vmatpush1.msra.mxu0 %v1570
          %1648 = vmatprep.subr.mxu0 %v1573
          %1649 = vmatpush1.msra.mxu0 %v1572
          %1650 = vmatprep.subr.mxu0 %v1575
          %1651 = vmatpush1.msra.mxu0 %v1574
          %1652 = vmatprep.subr.mxu0 %v1577
          %1653 = vmatpush1.msra.mxu0 %v1576
          %1654 = vmatprep.subr.mxu0 %v1579
          %1655 = vmatpush1.msra.mxu0 %v1578
          %1656 = vmatprep.subr.mxu0 %v1581
          %1657 = vmatpush1.msra.mxu0 %v1580
          %1658 = vmatprep.subr.mxu0 %v1583
          %1659 = vmatpush1.msra.mxu0 %v1582
          %1660 = vmatprep.subr.mxu0 %v1585
          %1661 = vmatpush1.msra.mxu0 %v1584
          %1662 = vmatprep.subr.mxu0 %v1587
          %1663 = vmatpush1.msra.mxu0 %v1586
          %1664 = vmatprep.subr.mxu0 %v1589
          %1665 = vmatpush1.msra.mxu0 %v1588
          %1666 = vmatprep.subr.mxu0 %v1591
          %1667 = vmatpush1.msra.mxu0 %v1590
          %1668 = vmatprep.subr.mxu0 %v1593
          %1669 = vmatpush1.msra.mxu0 %v1592
          %1670 = vmatprep.subr.mxu0 %v1595
          %1671 = vmatpush1.msra.mxu0 %v1594
          %1672 = vmatprep.subr.mxu0 %v1597
          %1673 = vmatpush1.msra.mxu0 %v1596
          %1674 = vmatprep.subr.mxu0 %v1599
          %1675 = vmatpush1.msra.mxu0 %v1598
          %1676 = vmatprep.subr.mxu0 %v1601
          %1677 = vmatpush1.msra.mxu0 %v1600
          %1678 = vmatprep.subr.mxu0 %v1603
          %1679 = vmatpush1.msra.mxu0 %v1602
          %1680 = vmatprep.subr.mxu0 %v1605
          %1681 = vmatpush1.msra.mxu0 %v1604
          %1682 = vmatprep.subr.mxu0 %v1607
          %1683 = vmatpush1.msra.mxu0 %v1606
          %1684 = vmatprep.subr.mxu0 %v1609
          %1685 = vmatpush1.msra.mxu0 %v1608
          %1686 = vmatprep.subr.mxu0 %v1611
          %1687 = vmatpush1.msra.mxu0 %v1610
          %1688 = vmatprep.subr.mxu0 %v1613
          %1689 = vmatpush1.msra.mxu0 %v1612
          %1690 = vmatprep.subr.mxu0 %v1615
          %1691 = vmatpush1.msra.mxu0 %v1614
          %1692 = vmatprep.mubr.f32.mxu0 %v1477
          %1693 = vmatmul.mubr.f32.gmra.mrb[0].mxu0 %v1476
          %v1694 = vpop.f32.mrb[0].mxu0
          %v1695 = vadd.f32 %v1621, %v1694
          %v1696 = vpop.f32.mrb[0].mxu0
          %v1697 = vadd.f32 %v1625, %v1696
          %1698 = vmatprep.mubr.f32.mxu0 %v1479
          %1699 = vmatmul.mubr.f32.gmra.mrb[0].mxu0 %v1478
          %v1700 = vpop.f32.mrb[0].mxu0
          %v1701 = vadd.f32 %v1621, %v1700
          %v1702 = vpop.f32.mrb[0].mxu0
          %v1703 = vadd.f32 %v1625, %v1702
          %1704 = vmatprep.mubr.f32.mxu0 %v1481
          %1705 = vmatmul.mubr.f32.gmra.mrb[0].mxu0 %v1480
          %v1706 = vpop.f32.mrb[0].mxu0
          %v1707 = vadd.f32 %v1621, %v1706
          %v1708 = vpop.f32.mrb[0].mxu0
          %v1709 = vadd.f32 %v1625, %v1708
          %1710 = vmatprep.mubr.f32.mxu0 %v1483
          %1711 = vmatmul.mubr.f32.gmra.mrb[0].mxu0 %v1482
          %v1712 = vpop.f32.mrb[0].mxu0
          %v1713 = vadd.f32 %v1621, %v1712
          %v1714 = vpop.f32.mrb[0].mxu0
          %v1715 = vadd.f32 %v1625, %v1714
          %1716 = vmatprep.mubr.f32.mxu0 %v1485
          %1717 = vmatmul.mubr.f32.gmra.mrb[0].mxu0 %v1484
          %v1718 = vpop.f32.mrb[0].mxu0
          %v1719 = vadd.f32 %v1621, %v1718
          %v1720 = vpop.f32.mrb[0].mxu0
          %v1721 = vadd.f32 %v1625, %v1720
          %1722 = vmatprep.mubr.f32.mxu0 %v1487
          %1723 = vmatmul.mubr.f32.gmra.mrb[0].mxu0 %v1486
          %v1724 = vpop.f32.mrb[0].mxu0
          %v1725 = vadd.f32 %v1621, %v1724
          %v1726 = vpop.f32.mrb[0].mxu0
          %v1727 = vadd.f32 %v1625, %v1726
          %1728 = vmatprep.mubr.f32.mxu0 %v1489
          %1729 = vmatmul.mubr.f32.gmra.mrb[0].mxu0 %v1488
          %v1730 = vpop.f32.mrb[0].mxu0
          %v1731 = vadd.f32 %v1621, %v1730
          %v1732 = vpop.f32.mrb[0].mxu0
          %v1733 = vadd.f32 %v1625, %v1732
          %1734 = vmatprep.mubr.f32.mxu0 %v1491
          %1735 = vmatmul.mubr.f32.gmra.mrb[0].mxu0 %v1490
          %v1736 = vpop.f32.mrb[0].mxu0
          %v1737 = vadd.f32 %v1621, %v1736
          %v1738 = vpop.f32.mrb[0].mxu0
          %v1739 = vadd.f32 %v1625, %v1738
          %1740 = vmatprep.mubr.f32.mxu0 %v1493
          %1741 = vmatmul.mubr.f32.gmra.mrb[0].mxu0 %v1492
          %v1742 = vpop.f32.mrb[0].mxu0
          %v1743 = vadd.f32 %v1621, %v1742
          %v1744 = vpop.f32.mrb[0].mxu0
          %v1745 = vadd.f32 %v1625, %v1744
          %1746 = vmatprep.mubr.f32.mxu0 %v1495
          %1747 = vmatmul.mubr.f32.gmra.mrb[0].mxu0 %v1494
          %v1748 = vpop.f32.mrb[0].mxu0
          %v1749 = vadd.f32 %v1621, %v1748
          %v1750 = vpop.f32.mrb[0].mxu0
          %v1751 = vadd.f32 %v1625, %v1750
          %1752 = vmatprep.mubr.f32.mxu0 %v1497
          %1753 = vmatmul.mubr.f32.gmra.mrb[0].mxu0 %v1496
          %v1754 = vpop.f32.mrb[0].mxu0
          %v1755 = vadd.f32 %v1621, %v1754
          %v1756 = vpop.f32.mrb[0].mxu0
          %v1757 = vadd.f32 %v1625, %v1756
          %1758 = vmatprep.mubr.f32.mxu0 %v1499
          %1759 = vmatmul.mubr.f32.gmra.mrb[0].mxu0 %v1498
          %v1760 = vpop.f32.mrb[0].mxu0
          %v1761 = vadd.f32 %v1621, %v1760
          %v1762 = vpop.f32.mrb[0].mxu0
          %v1763 = vadd.f32 %v1625, %v1762
          %1764 = vmatprep.mubr.f32.mxu0 %v1501
          %1765 = vmatmul.mubr.f32.gmra.mrb[0].mxu0 %v1500
          %v1766 = vpop.f32.mrb[0].mxu0
          %v1767 = vadd.f32 %v1621, %v1766
          %v1768 = vpop.f32.mrb[0].mxu0
          %v1769 = vadd.f32 %v1625, %v1768
          %1770 = vmatprep.mubr.f32.mxu0 %v1503
          %1771 = vmatmul.mubr.f32.gmra.mrb[0].mxu0 %v1502
          %v1772 = vpop.f32.mrb[0].mxu0
          %v1773 = vadd.f32 %v1621, %v1772
          %v1774 = vpop.f32.mrb[0].mxu0
          %v1775 = vadd.f32 %v1625, %v1774
          %1776 = vmatprep.mubr.f32.mxu0 %v1505
          %1777 = vmatmul.mubr.f32.gmra.mrb[0].mxu0 %v1504
          %v1778 = vpop.f32.mrb[0].mxu0
          %v1779 = vadd.f32 %v1621, %v1778
          %v1780 = vpop.f32.mrb[0].mxu0
          %v1781 = vadd.f32 %v1625, %v1780
          %1782 = vmatprep.mubr.f32.mxu0 %v1507
          %1783 = vmatmul.mubr.f32.gmra.mrb[0].mxu0 %v1506
          %v1784 = vpop.f32.mrb[0].mxu0
          %v1785 = vadd.f32 %v1621, %v1784
          %v1786 = vpop.f32.mrb[0].mxu0
          %v1787 = vadd.f32 %v1625, %v1786
          %1788 = vdwg.mxu0
          %vm1789 = vcmp.gt.f32.partialorder %v1695, 0.0
          %vm1790 = vcmp.gt.f32.partialorder %v1697, 0.0
          %vm1791 = vcmp.gt.f32.partialorder %v1701, 0.0
          %vm1792 = vcmp.gt.f32.partialorder %v1703, 0.0
          %vm1793 = vcmp.gt.f32.partialorder %v1707, 0.0
          %vm1794 = vcmp.gt.f32.partialorder %v1709, 0.0
          %vm1795 = vcmp.gt.f32.partialorder %v1713, 0.0
          %vm1796 = vcmp.gt.f32.partialorder %v1715, 0.0
          %vm1797 = vcmp.gt.f32.partialorder %v1719, 0.0
          %vm1798 = vcmp.gt.f32.partialorder %v1721, 0.0
          %vm1799 = vcmp.gt.f32.partialorder %v1725, 0.0
          %vm1800 = vcmp.gt.f32.partialorder %v1727, 0.0
          %vm1801 = vcmp.gt.f32.partialorder %v1731, 0.0
          %vm1802 = vcmp.gt.f32.partialorder %v1733, 0.0
          %vm1803 = vcmp.gt.f32.partialorder %v1737, 0.0
          %vm1804 = vcmp.gt.f32.partialorder %v1739, 0.0
          %vm1805 = vcmp.gt.f32.partialorder %v1743, 0.0
          %vm1806 = vcmp.gt.f32.partialorder %v1745, 0.0
          %vm1807 = vcmp.gt.f32.partialorder %v1749, 0.0
          %vm1808 = vcmp.gt.f32.partialorder %v1751, 0.0
          %vm1809 = vcmp.gt.f32.partialorder %v1755, 0.0
          %vm1810 = vcmp.gt.f32.partialorder %v1757, 0.0
          %vm1811 = vcmp.gt.f32.partialorder %v1761, 0.0
          %vm1812 = vcmp.gt.f32.partialorder %v1763, 0.0
          %vm1813 = vcmp.gt.f32.partialorder %v1767, 0.0
          %vm1814 = vcmp.gt.f32.partialorder %v1769, 0.0
          %vm1815 = vcmp.gt.f32.partialorder %v1773, 0.0
          %vm1816 = vcmp.gt.f32.partialorder %v1775, 0.0
          %vm1817 = vcmp.gt.f32.partialorder %v1779, 0.0
          %vm1818 = vcmp.gt.f32.partialorder %v1781, 0.0
          %vm1819 = vcmp.gt.f32.partialorder %v1785, 0.0
          %vm1820 = vcmp.gt.f32.partialorder %v1787, 0.0
          %v1821 = vmul.f32 %v1695, 0.01
          %v1822 = vmul.f32 %v1697, 0.01
          %v1823 = vmul.f32 %v1701, 0.01
          %v1824 = vmul.f32 %v1703, 0.01
          %v1825 = vmul.f32 %v1707, 0.01
          %v1826 = vmul.f32 %v1709, 0.01
          %v1827 = vmul.f32 %v1713, 0.01
          %v1828 = vmul.f32 %v1715, 0.01
          %v1829 = vmul.f32 %v1719, 0.01
          %v1830 = vmul.f32 %v1721, 0.01
          %v1831 = vmul.f32 %v1725, 0.01
          %v1832 = vmul.f32 %v1727, 0.01
          %v1833 = vmul.f32 %v1731, 0.01
          %v1834 = vmul.f32 %v1733, 0.01
          %v1835 = vmul.f32 %v1737, 0.01
          %v1836 = vmul.f32 %v1739, 0.01
          %v1837 = vmul.f32 %v1743, 0.01
          %v1838 = vmul.f32 %v1745, 0.01
          %v1839 = vmul.f32 %v1749, 0.01
          %v1840 = vmul.f32 %v1751, 0.01
          %v1841 = vmul.f32 %v1755, 0.01
          %v1842 = vmul.f32 %v1757, 0.01
          %v1843 = vmul.f32 %v1761, 0.01
          %v1844 = vmul.f32 %v1763, 0.01
          %v1845 = vmul.f32 %v1767, 0.01
          %v1846 = vmul.f32 %v1769, 0.01
          %v1847 = vmul.f32 %v1773, 0.01
          %v1848 = vmul.f32 %v1775, 0.01
          %v1849 = vmul.f32 %v1779, 0.01
          %v1850 = vmul.f32 %v1781, 0.01
          %v1851 = vmul.f32 %v1785, 0.01
          %v1852 = vmul.f32 %v1787, 0.01
          %v1853 = vsel %vm1789, %v1695, %v1821
          %v1854 = vsel %vm1790, %v1697, %v1822
          %v1855 = vsel %vm1791, %v1701, %v1823
          %v1856 = vsel %vm1792, %v1703, %v1824
          %v1857 = vsel %vm1793, %v1707, %v1825
          %v1858 = vsel %vm1794, %v1709, %v1826
          %v1859 = vsel %vm1795, %v1713, %v1827
          %v1860 = vsel %vm1796, %v1715, %v1828
          %v1861 = vsel %vm1797, %v1719, %v1829
          %v1862 = vsel %vm1798, %v1721, %v1830
          %v1863 = vsel %vm1799, %v1725, %v1831
          %v1864 = vsel %vm1800, %v1727, %v1832
          %v1865 = vsel %vm1801, %v1731, %v1833
          %v1866 = vsel %vm1802, %v1733, %v1834
          %v1867 = vsel %vm1803, %v1737, %v1835
          %v1868 = vsel %vm1804, %v1739, %v1836
          %v1869 = vsel %vm1805, %v1743, %v1837
          %v1870 = vsel %vm1806, %v1745, %v1838
          %v1871 = vsel %vm1807, %v1749, %v1839
          %v1872 = vsel %vm1808, %v1751, %v1840
          %v1873 = vsel %vm1809, %v1755, %v1841
          %v1874 = vsel %vm1810, %v1757, %v1842
          %v1875 = vsel %vm1811, %v1761, %v1843
          %v1876 = vsel %vm1812, %v1763, %v1844
          %v1877 = vsel %vm1813, %v1767, %v1845
          %v1878 = vsel %vm1814, %v1769, %v1846
          %v1879 = vsel %vm1815, %v1773, %v1847
          %v1880 = vsel %vm1816, %v1775, %v1848
          %v1881 = vsel %vm1817, %v1779, %v1849
          %v1882 = vsel %vm1818, %v1781, %v1850
          %v1883 = vsel %vm1819, %v1785, %v1851
          %v1884 = vsel %vm1820, %v1787, %v1852
          %v1885 = vld [vmem:[#allocation13] sm:$0xff]
          %v1886 = vld [vmem:[#allocation13 + $0x8] sm:$0xff]
          %v1887 = vld [vmem:[#allocation13 + $0x10] sm:$0xff]
          %v1888 = vld [vmem:[#allocation13 + $0x18] sm:$0xff]
          %v1889 = vld [vmem:[#allocation13 + $0x20] sm:$0xff]
          %v1890 = vld [vmem:[#allocation13 + $0x28] sm:$0xff]
          %v1891 = vld [vmem:[#allocation13 + $0x30] sm:$0xff]
          %v1892 = vld [vmem:[#allocation13 + $0x38] sm:$0xff]
          %v1893 = vld [vmem:[#allocation13 + $0x40] sm:$0xff]
          %v1894 = vld [vmem:[#allocation13 + $0x48] sm:$0xff]
          %v1895 = vld [vmem:[#allocation13 + $0x50] sm:$0xff]
          %v1896 = vld [vmem:[#allocation13 + $0x58] sm:$0xff]
          %v1897 = vld [vmem:[#allocation13 + $0x60] sm:$0xff]
          %v1898 = vld [vmem:[#allocation13 + $0x68] sm:$0xff]
          %v1899 = vld [vmem:[#allocation13 + $0x70] sm:$0xff]
          %v1900 = vld [vmem:[#allocation13 + $0x78] sm:$0xff]
          %v1901 = vld [vmem:[#allocation13 + $0x80] sm:$0xff]
          %v1902 = vld [vmem:[#allocation13 + $0x88] sm:$0xff]
          %v1903 = vld [vmem:[#allocation13 + $0x90] sm:$0xff]
          %v1904 = vld [vmem:[#allocation13 + $0x98] sm:$0xff]
          %v1905 = vld [vmem:[#allocation13 + $0xa0] sm:$0xff]
          %v1906 = vld [vmem:[#allocation13 + $0xa8] sm:$0xff]
          %v1907 = vld [vmem:[#allocation13 + $0xb0] sm:$0xff]
          %v1908 = vld [vmem:[#allocation13 + $0xb8] sm:$0xff]
          %v1909 = vld [vmem:[#allocation13 + $0xc0] sm:$0xff]
          %v1910 = vld [vmem:[#allocation13 + $0xc8] sm:$0xff]
          %v1911 = vld [vmem:[#allocation13 + $0xd0] sm:$0xff]
          %v1912 = vld [vmem:[#allocation13 + $0xd8] sm:$0xff]
          %v1913 = vld [vmem:[#allocation13 + $0xe0] sm:$0xff]
          %v1914 = vld [vmem:[#allocation13 + $0xe8] sm:$0xff]
          %v1915 = vld [vmem:[#allocation13 + $0xf0] sm:$0xff]
          %v1916 = vld [vmem:[#allocation13 + $0xf8] sm:$0xff]
          %v1917 = vld [vmem:[#allocation13 + $0x100] sm:$0xff]
          %v1918 = vld [vmem:[#allocation13 + $0x108] sm:$0xff]
          %v1919 = vld [vmem:[#allocation13 + $0x110] sm:$0xff]
          %v1920 = vld [vmem:[#allocation13 + $0x118] sm:$0xff]
          %v1921 = vld [vmem:[#allocation13 + $0x120] sm:$0xff]
          %v1922 = vld [vmem:[#allocation13 + $0x128] sm:$0xff]
          %v1923 = vld [vmem:[#allocation13 + $0x130] sm:$0xff]
          %v1924 = vld [vmem:[#allocation13 + $0x138] sm:$0xff]
          %v1925 = vld [vmem:[#allocation13 + $0x140] sm:$0xff]
          %v1926 = vld [vmem:[#allocation13 + $0x148] sm:$0xff]
          %v1927 = vld [vmem:[#allocation13 + $0x150] sm:$0xff]
          %v1928 = vld [vmem:[#allocation13 + $0x158] sm:$0xff]
          %v1929 = vld [vmem:[#allocation13 + $0x160] sm:$0xff]
          %v1930 = vld [vmem:[#allocation13 + $0x168] sm:$0xff]
          %v1931 = vld [vmem:[#allocation13 + $0x170] sm:$0xff]
          %v1932 = vld [vmem:[#allocation13 + $0x178] sm:$0xff]
          %v1933 = vld [vmem:[#allocation13 + $0x180] sm:$0xff]
          %v1934 = vld [vmem:[#allocation13 + $0x188] sm:$0xff]
          %v1935 = vld [vmem:[#allocation13 + $0x190] sm:$0xff]
          %v1936 = vld [vmem:[#allocation13 + $0x198] sm:$0xff]
          %v1937 = vld [vmem:[#allocation13 + $0x1a0] sm:$0xff]
          %v1938 = vld [vmem:[#allocation13 + $0x1a8] sm:$0xff]
          %v1939 = vld [vmem:[#allocation13 + $0x1b0] sm:$0xff]
          %v1940 = vld [vmem:[#allocation13 + $0x1b8] sm:$0xff]
          %v1941 = vld [vmem:[#allocation13 + $0x1c0] sm:$0xff]
          %v1942 = vld [vmem:[#allocation13 + $0x1c8] sm:$0xff]
          %v1943 = vld [vmem:[#allocation13 + $0x1d0] sm:$0xff]
          %v1944 = vld [vmem:[#allocation13 + $0x1d8] sm:$0xff]
          %v1945 = vld [vmem:[#allocation13 + $0x1e0] sm:$0xff]
          %v1946 = vld [vmem:[#allocation13 + $0x1e8] sm:$0xff]
          %v1947 = vld [vmem:[#allocation13 + $0x1f0] sm:$0xff]
          %v1948 = vld [vmem:[#allocation13 + $0x1f8] sm:$0xff]
          %v1949 = vld [vmem:[%s10] sm:$0x3]
          %v1951 = vlaneseq
          %v1952 = vshrl.u32 %v1951, 7
          %v1953 = vsub.s32 0, %v1952
          %v1954 = vrot.slane %v1949, %v1953
          %v1955 = vlaneseq
          %v1956 = vshrl.u32 %v1955, 7
          %v1957 = vsub.s32 1, %v1956
          %v1958 = vrot.slane %v1949, %v1957
          %1961 = vmatprep.subr.mxu0 %v1886
          %1962 = vmatpush1.msra.mxu0 %v1885
          %1963 = vmatprep.subr.mxu0 %v1888
          %1964 = vmatpush1.msra.mxu0 %v1887
          %1965 = vmatprep.subr.mxu0 %v1890
          %1966 = vmatpush1.msra.mxu0 %v1889
          %1967 = vmatprep.subr.mxu0 %v1892
          %1968 = vmatpush1.msra.mxu0 %v1891
          %1969 = vmatprep.subr.mxu0 %v1894
          %1970 = vmatpush1.msra.mxu0 %v1893
          %1971 = vmatprep.subr.mxu0 %v1896
          %1972 = vmatpush1.msra.mxu0 %v1895
          %1973 = vmatprep.subr.mxu0 %v1898
          %1974 = vmatpush1.msra.mxu0 %v1897
          %1975 = vmatprep.subr.mxu0 %v1900
          %1976 = vmatpush1.msra.mxu0 %v1899
          %1977 = vmatprep.subr.mxu0 %v1902
          %1978 = vmatpush1.msra.mxu0 %v1901
          %1979 = vmatprep.subr.mxu0 %v1904
          %1980 = vmatpush1.msra.mxu0 %v1903
          %1981 = vmatprep.subr.mxu0 %v1906
          %1982 = vmatpush1.msra.mxu0 %v1905
          %1983 = vmatprep.subr.mxu0 %v1908
          %1984 = vmatpush1.msra.mxu0 %v1907
          %1985 = vmatprep.subr.mxu0 %v1910
          %1986 = vmatpush1.msra.mxu0 %v1909
          %1987 = vmatprep.subr.mxu0 %v1912
          %1988 = vmatpush1.msra.mxu0 %v1911
          %1989 = vmatprep.subr.mxu0 %v1914
          %1990 = vmatpush1.msra.mxu0 %v1913
          %1991 = vmatprep.subr.mxu0 %v1916
          %1992 = vmatpush1.msra.mxu0 %v1915
          %1993 = vmatprep.subr.mxu0 %v1918
          %1994 = vmatpush1.msra.mxu0 %v1917
          %1995 = vmatprep.subr.mxu0 %v1920
          %1996 = vmatpush1.msra.mxu0 %v1919
          %1997 = vmatprep.subr.mxu0 %v1922
          %1998 = vmatpush1.msra.mxu0 %v1921
          %1999 = vmatprep.subr.mxu0 %v1924
          %2000 = vmatpush1.msra.mxu0 %v1923
          %2001 = vmatprep.subr.mxu0 %v1926
          %2002 = vmatpush1.msra.mxu0 %v1925
          %2003 = vmatprep.subr.mxu0 %v1928
          %2004 = vmatpush1.msra.mxu0 %v1927
          %2005 = vmatprep.subr.mxu0 %v1930
          %2006 = vmatpush1.msra.mxu0 %v1929
          %2007 = vmatprep.subr.mxu0 %v1932
          %2008 = vmatpush1.msra.mxu0 %v1931
          %2009 = vmatprep.subr.mxu0 %v1934
          %2010 = vmatpush1.msra.mxu0 %v1933
          %2011 = vmatprep.subr.mxu0 %v1936
          %2012 = vmatpush1.msra.mxu0 %v1935
          %2013 = vmatprep.subr.mxu0 %v1938
          %2014 = vmatpush1.msra.mxu0 %v1937
          %2015 = vmatprep.subr.mxu0 %v1940
          %2016 = vmatpush1.msra.mxu0 %v1939
          %2017 = vmatprep.subr.mxu0 %v1942
          %2018 = vmatpush1.msra.mxu0 %v1941
          %2019 = vmatprep.subr.mxu0 %v1944
          %2020 = vmatpush1.msra.mxu0 %v1943
          %2021 = vmatprep.subr.mxu0 %v1946
          %2022 = vmatpush1.msra.mxu0 %v1945
          %2023 = vmatprep.subr.mxu0 %v1948
          %2024 = vmatpush1.msra.mxu0 %v1947
          %2025 = vmatprep.mubr.f32.mxu0 %v1854
          %2026 = vmatmul.mubr.f32.gmra.mrb[0].mxu0 %v1853
          %v2027 = vpop.f32.mrb[0].mxu0
          %v2028 = vadd.f32 %v1954, %v2027
          %v2029 = vpop.f32.mrb[0].mxu0
          %v2030 = vadd.f32 %v1958, %v2029
          %2031 = vmatprep.mubr.f32.mxu0 %v1856
          %2032 = vmatmul.mubr.f32.gmra.mrb[0].mxu0 %v1855
          %v2033 = vpop.f32.mrb[0].mxu0
          %v2034 = vadd.f32 %v1954, %v2033
          %v2035 = vpop.f32.mrb[0].mxu0
          %v2036 = vadd.f32 %v1958, %v2035
          %2037 = vmatprep.mubr.f32.mxu0 %v1858
          %2038 = vmatmul.mubr.f32.gmra.mrb[0].mxu0 %v1857
          %v2039 = vpop.f32.mrb[0].mxu0
          %v2040 = vadd.f32 %v1954, %v2039
          %v2041 = vpop.f32.mrb[0].mxu0
          %v2042 = vadd.f32 %v1958, %v2041
          %2043 = vmatprep.mubr.f32.mxu0 %v1860
          %2044 = vmatmul.mubr.f32.gmra.mrb[0].mxu0 %v1859
          %v2045 = vpop.f32.mrb[0].mxu0
          %v2046 = vadd.f32 %v1954, %v2045
          %v2047 = vpop.f32.mrb[0].mxu0
          %v2048 = vadd.f32 %v1958, %v2047
          %2049 = vmatprep.mubr.f32.mxu0 %v1862
          %2050 = vmatmul.mubr.f32.gmra.mrb[0].mxu0 %v1861
          %v2051 = vpop.f32.mrb[0].mxu0
          %v2052 = vadd.f32 %v1954, %v2051
          %v2053 = vpop.f32.mrb[0].mxu0
          %v2054 = vadd.f32 %v1958, %v2053
          %2055 = vmatprep.mubr.f32.mxu0 %v1864
          %2056 = vmatmul.mubr.f32.gmra.mrb[0].mxu0 %v1863
          %v2057 = vpop.f32.mrb[0].mxu0
          %v2058 = vadd.f32 %v1954, %v2057
          %v2059 = vpop.f32.mrb[0].mxu0
          %v2060 = vadd.f32 %v1958, %v2059
          %2061 = vmatprep.mubr.f32.mxu0 %v1866
          %2062 = vmatmul.mubr.f32.gmra.mrb[0].mxu0 %v1865
          %v2063 = vpop.f32.mrb[0].mxu0
          %v2064 = vadd.f32 %v1954, %v2063
          %v2065 = vpop.f32.mrb[0].mxu0
          %v2066 = vadd.f32 %v1958, %v2065
          %2067 = vmatprep.mubr.f32.mxu0 %v1868
          %2068 = vmatmul.mubr.f32.gmra.mrb[0].mxu0 %v1867
          %v2069 = vpop.f32.mrb[0].mxu0
          %v2070 = vadd.f32 %v1954, %v2069
          %v2071 = vpop.f32.mrb[0].mxu0
          %v2072 = vadd.f32 %v1958, %v2071
          %2073 = vmatprep.mubr.f32.mxu0 %v1870
          %2074 = vmatmul.mubr.f32.gmra.mrb[0].mxu0 %v1869
          %v2075 = vpop.f32.mrb[0].mxu0
          %v2076 = vadd.f32 %v1954, %v2075
          %v2077 = vpop.f32.mrb[0].mxu0
          %v2078 = vadd.f32 %v1958, %v2077
          %2079 = vmatprep.mubr.f32.mxu0 %v1872
          %2080 = vmatmul.mubr.f32.gmra.mrb[0].mxu0 %v1871
          %v2081 = vpop.f32.mrb[0].mxu0
          %v2082 = vadd.f32 %v1954, %v2081
          %v2083 = vpop.f32.mrb[0].mxu0
          %v2084 = vadd.f32 %v1958, %v2083
          %2085 = vmatprep.mubr.f32.mxu0 %v1874
          %2086 = vmatmul.mubr.f32.gmra.mrb[0].mxu0 %v1873
          %v2087 = vpop.f32.mrb[0].mxu0
          %v2088 = vadd.f32 %v1954, %v2087
          %v2089 = vpop.f32.mrb[0].mxu0
          %v2090 = vadd.f32 %v1958, %v2089
          %2091 = vmatprep.mubr.f32.mxu0 %v1876
          %2092 = vmatmul.mubr.f32.gmra.mrb[0].mxu0 %v1875
          %v2093 = vpop.f32.mrb[0].mxu0
          %v2094 = vadd.f32 %v1954, %v2093
          %v2095 = vpop.f32.mrb[0].mxu0
          %v2096 = vadd.f32 %v1958, %v2095
          %2097 = vmatprep.mubr.f32.mxu0 %v1878
          %2098 = vmatmul.mubr.f32.gmra.mrb[0].mxu0 %v1877
          %v2099 = vpop.f32.mrb[0].mxu0
          %v2100 = vadd.f32 %v1954, %v2099
          %v2101 = vpop.f32.mrb[0].mxu0
          %v2102 = vadd.f32 %v1958, %v2101
          %2103 = vmatprep.mubr.f32.mxu0 %v1880
          %2104 = vmatmul.mubr.f32.gmra.mrb[0].mxu0 %v1879
          %v2105 = vpop.f32.mrb[0].mxu0
          %v2106 = vadd.f32 %v1954, %v2105
          %v2107 = vpop.f32.mrb[0].mxu0
          %v2108 = vadd.f32 %v1958, %v2107
          %2109 = vmatprep.mubr.f32.mxu0 %v1882
          %2110 = vmatmul.mubr.f32.gmra.mrb[0].mxu0 %v1881
          %v2111 = vpop.f32.mrb[0].mxu0
          %v2112 = vadd.f32 %v1954, %v2111
          %v2113 = vpop.f32.mrb[0].mxu0
          %v2114 = vadd.f32 %v1958, %v2113
          %2115 = vmatprep.mubr.f32.mxu0 %v1884
          %2116 = vmatmul.mubr.f32.gmra.mrb[0].mxu0 %v1883
          %v2117 = vpop.f32.mrb[0].mxu0
          %v2118 = vadd.f32 %v1954, %v2117
          %v2119 = vpop.f32.mrb[0].mxu0
          %v2120 = vadd.f32 %v1958, %v2119
          %2121 = vdwg.mxu0
          %vm2122 = vcmp.gt.f32.partialorder %v2028, 0.0
          %vm2123 = vcmp.gt.f32.partialorder %v2030, 0.0
          %vm2124 = vcmp.gt.f32.partialorder %v2034, 0.0
          %vm2125 = vcmp.gt.f32.partialorder %v2036, 0.0
          %vm2126 = vcmp.gt.f32.partialorder %v2040, 0.0
          %vm2127 = vcmp.gt.f32.partialorder %v2042, 0.0
          %vm2128 = vcmp.gt.f32.partialorder %v2046, 0.0
          %vm2129 = vcmp.gt.f32.partialorder %v2048, 0.0
          %vm2130 = vcmp.gt.f32.partialorder %v2052, 0.0
          %vm2131 = vcmp.gt.f32.partialorder %v2054, 0.0
          %vm2132 = vcmp.gt.f32.partialorder %v2058, 0.0
          %vm2133 = vcmp.gt.f32.partialorder %v2060, 0.0
          %vm2134 = vcmp.gt.f32.partialorder %v2064, 0.0
          %vm2135 = vcmp.gt.f32.partialorder %v2066, 0.0
          %vm2136 = vcmp.gt.f32.partialorder %v2070, 0.0
          %vm2137 = vcmp.gt.f32.partialorder %v2072, 0.0
          %vm2138 = vcmp.gt.f32.partialorder %v2076, 0.0
          %vm2139 = vcmp.gt.f32.partialorder %v2078, 0.0
          %vm2140 = vcmp.gt.f32.partialorder %v2082, 0.0
          %vm2141 = vcmp.gt.f32.partialorder %v2084, 0.0
          %vm2142 = vcmp.gt.f32.partialorder %v2088, 0.0
          %vm2143 = vcmp.gt.f32.partialorder %v2090, 0.0
          %vm2144 = vcmp.gt.f32.partialorder %v2094, 0.0
          %vm2145 = vcmp.gt.f32.partialorder %v2096, 0.0
          %vm2146 = vcmp.gt.f32.partialorder %v2100, 0.0
          %vm2147 = vcmp.gt.f32.partialorder %v2102, 0.0
          %vm2148 = vcmp.gt.f32.partialorder %v2106, 0.0
          %vm2149 = vcmp.gt.f32.partialorder %v2108, 0.0
          %vm2150 = vcmp.gt.f32.partialorder %v2112, 0.0
          %vm2151 = vcmp.gt.f32.partialorder %v2114, 0.0
          %vm2152 = vcmp.gt.f32.partialorder %v2118, 0.0
          %vm2153 = vcmp.gt.f32.partialorder %v2120, 0.0
          %v2154 = vmul.f32 %v2028, 0.01
          %v2155 = vmul.f32 %v2030, 0.01
          %v2156 = vmul.f32 %v2034, 0.01
          %v2157 = vmul.f32 %v2036, 0.01
          %v2158 = vmul.f32 %v2040, 0.01
          %v2159 = vmul.f32 %v2042, 0.01
          %v2160 = vmul.f32 %v2046, 0.01
          %v2161 = vmul.f32 %v2048, 0.01
          %v2162 = vmul.f32 %v2052, 0.01
          %v2163 = vmul.f32 %v2054, 0.01
          %v2164 = vmul.f32 %v2058, 0.01
          %v2165 = vmul.f32 %v2060, 0.01
          %v2166 = vmul.f32 %v2064, 0.01
          %v2167 = vmul.f32 %v2066, 0.01
          %v2168 = vmul.f32 %v2070, 0.01
          %v2169 = vmul.f32 %v2072, 0.01
          %v2170 = vmul.f32 %v2076, 0.01
          %v2171 = vmul.f32 %v2078, 0.01
          %v2172 = vmul.f32 %v2082, 0.01
          %v2173 = vmul.f32 %v2084, 0.01
          %v2174 = vmul.f32 %v2088, 0.01
          %v2175 = vmul.f32 %v2090, 0.01
          %v2176 = vmul.f32 %v2094, 0.01
          %v2177 = vmul.f32 %v2096, 0.01
          %v2178 = vmul.f32 %v2100, 0.01
          %v2179 = vmul.f32 %v2102, 0.01
          %v2180 = vmul.f32 %v2106, 0.01
          %v2181 = vmul.f32 %v2108, 0.01
          %v2182 = vmul.f32 %v2112, 0.01
          %v2183 = vmul.f32 %v2114, 0.01
          %v2184 = vmul.f32 %v2118, 0.01
          %v2185 = vmul.f32 %v2120, 0.01
          %v2186 = vsel %vm2122, %v2028, %v2154
          %v2187 = vsel %vm2123, %v2030, %v2155
          %v2188 = vsel %vm2124, %v2034, %v2156
          %v2189 = vsel %vm2125, %v2036, %v2157
          %v2190 = vsel %vm2126, %v2040, %v2158
          %v2191 = vsel %vm2127, %v2042, %v2159
          %v2192 = vsel %vm2128, %v2046, %v2160
          %v2193 = vsel %vm2129, %v2048, %v2161
          %v2194 = vsel %vm2130, %v2052, %v2162
          %v2195 = vsel %vm2131, %v2054, %v2163
          %v2196 = vsel %vm2132, %v2058, %v2164
          %v2197 = vsel %vm2133, %v2060, %v2165
          %v2198 = vsel %vm2134, %v2064, %v2166
          %v2199 = vsel %vm2135, %v2066, %v2167
          %v2200 = vsel %vm2136, %v2070, %v2168
          %v2201 = vsel %vm2137, %v2072, %v2169
          %v2202 = vsel %vm2138, %v2076, %v2170
          %v2203 = vsel %vm2139, %v2078, %v2171
          %v2204 = vsel %vm2140, %v2082, %v2172
          %v2205 = vsel %vm2141, %v2084, %v2173
          %v2206 = vsel %vm2142, %v2088, %v2174
          %v2207 = vsel %vm2143, %v2090, %v2175
          %v2208 = vsel %vm2144, %v2094, %v2176
          %v2209 = vsel %vm2145, %v2096, %v2177
          %v2210 = vsel %vm2146, %v2100, %v2178
          %v2211 = vsel %vm2147, %v2102, %v2179
          %v2212 = vsel %vm2148, %v2106, %v2180
          %v2213 = vsel %vm2149, %v2108, %v2181
          %v2214 = vsel %vm2150, %v2112, %v2182
          %v2215 = vsel %vm2151, %v2114, %v2183
          %v2216 = vsel %vm2152, %v2118, %v2184
          %v2217 = vsel %vm2153, %v2120, %v2185
          %v2218 = vld [vmem:[%s11] sm:$0x3]
          %v2220 = vlaneseq
          %v2221 = vshrl.u32 %v2220, 7
          %v2222 = vsub.s32 0, %v2221
          %v2223 = vrot.slane %v2218, %v2222
          %v2224 = vlaneseq
          %v2225 = vshrl.u32 %v2224, 7
          %v2226 = vsub.s32 1, %v2225
          %v2227 = vrot.slane %v2218, %v2226
          %v2230 = vmul.f32 %v2186, %v2223
          %v2231 = vmul.f32 %v2187, %v2227
          %v2232 = vmul.f32 %v2188, %v2223
          %v2233 = vmul.f32 %v2189, %v2227
          %v2234 = vmul.f32 %v2190, %v2223
          %v2235 = vmul.f32 %v2191, %v2227
          %v2236 = vmul.f32 %v2192, %v2223
          %v2237 = vmul.f32 %v2193, %v2227
          %v2238 = vmul.f32 %v2194, %v2223
          %v2239 = vmul.f32 %v2195, %v2227
          %v2240 = vmul.f32 %v2196, %v2223
          %v2241 = vmul.f32 %v2197, %v2227
          %v2242 = vmul.f32 %v2198, %v2223
          %v2243 = vmul.f32 %v2199, %v2227
          %v2244 = vmul.f32 %v2200, %v2223
          %v2245 = vmul.f32 %v2201, %v2227
          %v2246 = vmul.f32 %v2202, %v2223
          %v2247 = vmul.f32 %v2203, %v2227
          %v2248 = vmul.f32 %v2204, %v2223
          %v2249 = vmul.f32 %v2205, %v2227
          %v2250 = vmul.f32 %v2206, %v2223
          %v2251 = vmul.f32 %v2207, %v2227
          %v2252 = vmul.f32 %v2208, %v2223
          %v2253 = vmul.f32 %v2209, %v2227
          %v2254 = vmul.f32 %v2210, %v2223
          %v2255 = vmul.f32 %v2211, %v2227
          %v2256 = vmul.f32 %v2212, %v2223
          %v2257 = vmul.f32 %v2213, %v2227
          %v2258 = vmul.f32 %v2214, %v2223
          %v2259 = vmul.f32 %v2215, %v2227
          %v2260 = vmul.f32 %v2216, %v2223
          %v2261 = vmul.f32 %v2217, %v2227
          %v2262 = vadd.f32 %v2230, %v2231
          %2263 = vadd.xlane.f32.xlu0 %v2262
          %v2264 = vpop.xlane.xlu0 %2263
          %v2265 = vadd.f32 %v2232, %v2233
          %2266 = vadd.xlane.f32.xlu0 %v2265
          %v2267 = vpop.xlane.xlu0 %2266
          %v2268 = vadd.f32 %v2234, %v2235
          %2269 = vadd.xlane.f32.xlu0 %v2268
          %v2270 = vpop.xlane.xlu0 %2269
          %v2271 = vadd.f32 %v2236, %v2237
          %2272 = vadd.xlane.f32.xlu0 %v2271
          %v2273 = vpop.xlane.xlu0 %2272
          %v2274 = vadd.f32 %v2238, %v2239
          %2275 = vadd.xlane.f32.xlu0 %v2274
          %v2276 = vpop.xlane.xlu0 %2275
          %v2277 = vadd.f32 %v2240, %v2241
          %2278 = vadd.xlane.f32.xlu0 %v2277
          %v2279 = vpop.xlane.xlu0 %2278
          %v2280 = vadd.f32 %v2242, %v2243
          %2281 = vadd.xlane.f32.xlu0 %v2280
          %v2282 = vpop.xlane.xlu0 %2281
          %v2283 = vadd.f32 %v2244, %v2245
          %2284 = vadd.xlane.f32.xlu0 %v2283
          %v2285 = vpop.xlane.xlu0 %2284
          %v2286 = vadd.f32 %v2246, %v2247
          %2287 = vadd.xlane.f32.xlu0 %v2286
          %v2288 = vpop.xlane.xlu0 %2287
          %v2289 = vadd.f32 %v2248, %v2249
          %2290 = vadd.xlane.f32.xlu0 %v2289
          %v2291 = vpop.xlane.xlu0 %2290
          %v2292 = vadd.f32 %v2250, %v2251
          %2293 = vadd.xlane.f32.xlu0 %v2292
          %v2294 = vpop.xlane.xlu0 %2293
          %v2295 = vadd.f32 %v2252, %v2253
          %2296 = vadd.xlane.f32.xlu0 %v2295
          %v2297 = vpop.xlane.xlu0 %2296
          %v2298 = vadd.f32 %v2254, %v2255
          %2299 = vadd.xlane.f32.xlu0 %v2298
          %v2300 = vpop.xlane.xlu0 %2299
          %v2301 = vadd.f32 %v2256, %v2257
          %2302 = vadd.xlane.f32.xlu0 %v2301
          %v2303 = vpop.xlane.xlu0 %2302
          %v2304 = vadd.f32 %v2258, %v2259
          %2305 = vadd.xlane.f32.xlu0 %v2304
          %v2306 = vpop.xlane.xlu0 %2305
          %v2307 = vadd.f32 %v2260, %v2261
          %2308 = vadd.xlane.f32.xlu0 %v2307
          %v2309 = vpop.xlane.xlu0 %2308
          %v2310 = vld [vmem:[#allocation5] sm:$0x1]
          %v2312 = vlaneseq
          %v2313 = vshrl.u32 %v2312, 7
          %v2314 = vsub.s32 0, %v2313
          %v2315 = vrot.slane %v2310, %v2314
          %v2317 = vadd.f32 %v2264, %v2315
          %v2318 = vadd.f32 %v2267, %v2315
          %v2319 = vadd.f32 %v2270, %v2315
          %v2320 = vadd.f32 %v2273, %v2315
          %v2321 = vadd.f32 %v2276, %v2315
          %v2322 = vadd.f32 %v2279, %v2315
          %v2323 = vadd.f32 %v2282, %v2315
          %v2324 = vadd.f32 %v2285, %v2315
          %v2325 = vadd.f32 %v2288, %v2315
          %v2326 = vadd.f32 %v2291, %v2315
          %v2327 = vadd.f32 %v2294, %v2315
          %v2328 = vadd.f32 %v2297, %v2315
          %v2329 = vadd.f32 %v2300, %v2315
          %v2330 = vadd.f32 %v2303, %v2315
          %v2331 = vadd.f32 %v2306, %v2315
          %v2332 = vadd.f32 %v2309, %v2315
          %s2333 = scalar_lea.vmem %s13, %s526
          %vm2334 = vcmask 7168
          %2335 = vst.msk [vmem:[%s2333] sm:$0xff] %vm2334, %v2317
          %2336 = vst.msk [vmem:[%s2333 + $0x8] sm:$0xff] %vm2334, %v2318
          %2337 = vst.msk [vmem:[%s2333 + $0x10] sm:$0xff] %vm2334, %v2319
          %2338 = vst.msk [vmem:[%s2333 + $0x18] sm:$0xff] %vm2334, %v2320
          %2339 = vst.msk [vmem:[%s2333 + $0x20] sm:$0xff] %vm2334, %v2321
          %2340 = vst.msk [vmem:[%s2333 + $0x28] sm:$0xff] %vm2334, %v2322
          %2341 = vst.msk [vmem:[%s2333 + $0x30] sm:$0xff] %vm2334, %v2323
          %2342 = vst.msk [vmem:[%s2333 + $0x38] sm:$0xff] %vm2334, %v2324
          %2343 = vst.msk [vmem:[%s2333 + $0x40] sm:$0xff] %vm2334, %v2325
          %2344 = vst.msk [vmem:[%s2333 + $0x48] sm:$0xff] %vm2334, %v2326
          %2345 = vst.msk [vmem:[%s2333 + $0x50] sm:$0xff] %vm2334, %v2327
          %2346 = vst.msk [vmem:[%s2333 + $0x58] sm:$0xff] %vm2334, %v2328
          %2347 = vst.msk [vmem:[%s2333 + $0x60] sm:$0xff] %vm2334, %v2329
          %2348 = vst.msk [vmem:[%s2333 + $0x68] sm:$0xff] %vm2334, %v2330
          %2349 = vst.msk [vmem:[%s2333 + $0x70] sm:$0xff] %vm2334, %v2331
          %2350 = vst.msk [vmem:[%s2333 + $0x78] sm:$0xff] %vm2334, %v2332
        $region100: #{tpu_custom_call.1} parent=63 // pred_fallthru
          _
        // Predicated region
        $region101: #{tpu_custom_call.1} parent=63 // pred_check
          %p2351 = pneg %p310
        $region102: #{tpu_custom_call.1} parent=63 // pred_check_branch
          %2353 = sbr.rel (%p2351) target = $region104
        $region103: #{tpu_custom_call.1} parent=63 // pred_region
          _
        $region104: #{tpu_custom_call.1} parent=63 // pred_fallthru
          _
        // Predicated region
        $region105: #{tpu_custom_call.1} parent=63 // pred_check
          %p2354 = pneg %p310
        $region106: #{tpu_custom_call.1} parent=63 // pred_check_branch
          %2356 = sbr.rel (%p2354) target = $region108
        $region107: #{tpu_custom_call.1} parent=63 // pred_region
          _
        $region108: #{tpu_custom_call.1} parent=63 // pred_fallthru
          _
      $region64: #{tpu_custom_call.1} parent=5 // pred_fallthru
        _
      %p2357 = scmp.le.s32.totalorder 2, %s29
      // Predicated region
      $region109: #{tpu_custom_call.1} parent=5 // pred_check
        %p2358 = pneg %p2357
      $region110: #{tpu_custom_call.1} parent=5 // pred_check_branch
        %2360 = sbr.rel (%p2358) target = $region112
      $region111: #{tpu_custom_call.1} parent=5 // pred_region
        %s2361 = ssub.s32 %s29, 2
      $region112: #{tpu_custom_call.1} parent=5 // pred_fallthru
        _
    $region6: #{tpu_custom_call.1} parent=1 // loop_footer
      %s33 = sadd.s32 1, %s29
    $region7: #{tpu_custom_call.1} parent=1 // loop_footer_branch
      %28 = sbr.rel target = $region3
    $region8: #{tpu_custom_call.1} parent=1 // loop_exit
      _
    %2362 = vsyncpa [#allocation7], 1
    %s2363 = scalar_lea.sflag [#allocation7], 1
    %2364 = vsyncpa %s2363, 1
    %2365 = vsyncpa [#allocation11], 1
    %s2366 = scalar_lea.sflag [#allocation11], 1
    %2367 = vsyncpa %s2366, 1
    %2368 = vsyncpa [#allocation14], 1
    %2369 = vsyncpa [#allocation8], 1
    %s2370 = scalar_lea.sflag [#allocation8], 1
    %2371 = vsyncpa %s2370, 1
  %2372 = vsyncmov [#allocation3]
  %s2373 = vpop.sfrf %2372
  %p2374 = scmp.eq.s32.totalorder %s2373, 0
  %p2375 = pneg %p2374
  %2377 = shalt.err (%p2375)

</llo_original>
